<compile_context>
chip_gen: v5e
topology: v5e:2x2
jax: 0.10.0
libtpu: 0.0.40
codegen_flags: <defaults>
</compile_context>

<pallas_src>
import functools

import jax
import jax.numpy as jnp
from jax import lax
from jax.experimental import pallas as pl
from jax.experimental.pallas import tpu as pltpu

# Tap order (dy, dx), row-major, matching the (kh, kw) order of the weights.
_TAPS = tuple((dy, dx) for dy in (-1, 0, 1) for dx in (-1, 0, 1))


def _residual_block_kernel(x_ref, w1_ref, b1_ref, w2_ref, b2_ref, out_ref, *,
                           width):
    """Processes `nblk` images per grid step.

    x_ref  : (nblk, C, H*W) f32  activation slab (NCHW, spatial flattened)
    w1_ref : (9, C, C)           conv1 per-tap weights, BN1 scale folded in
    b1_ref : (C, 1)         f32  conv1 bias + BN1 shift (folded)
    w2_ref : (9, C, C)           conv2 per-tap weights, BN2 scale folded in
    b2_ref : (C, 1)         f32  conv2 bias + BN2 shift (folded)
    out_ref: (nblk, C, H*W) f32  output slab
    """
    nblk, chan, hw = x_ref.shape
    w = width

    # Horizontal-boundary masks, shared by both convs and all images in the
    # block.  Vertical boundaries are handled by the zero fill of the lane
    # shifts below (flattened index runs out of [0, H*W)).
    col = lax.broadcasted_iota(jnp.int32, (chan, hw), 1) % w
    ok_left = col >= 1            # source column w-1 exists
    ok_right = col < (w - 1)      # source column w+1 exists

    def shift(v, delta):
        # y[:, p] = v[:, p + delta], zero fill past either end (XLU work only;
        # no staging buffer, no offset stores).
        if delta == 0:
            return v
        pad = jnp.zeros((chan, abs(delta)), v.dtype)
        if delta > 0:
            return jnp.concatenate([v[:, delta:], pad], axis=1)
        return jnp.concatenate([pad, v[:, :delta]], axis=1)

    def conv3x3(v, w_ref, b_ref):
        # v: (C, H*W) f32.  Returns conv + folded BN shift, f32.
        acc = None
        for t, (dy, dx) in enumerate(_TAPS):
            tap = shift(v, dy * w + dx)
            if dx == 1:
                tap = jnp.where(ok_right, tap, 0.0)
            elif dx == -1:
                tap = jnp.where(ok_left, tap, 0.0)
            d = jnp.dot(w_ref[t], tap.astype(w_ref.dtype),
                        preferred_element_type=jnp.float32)
            acc = d if acc is None else acc + d
        return acc + b_ref[...]                      # (C, H*W) + (C, 1)

    for img in range(nblk):
        xb = x_ref[img]                                       # (C, H*W) f32
        y1 = jnp.maximum(conv3x3(xb, w1_ref, b1_ref), 0.0)    # conv1+BN1+ReLU
        y2 = conv3x3(y1, w2_ref, b2_ref)                      # conv2+BN2
        out_ref[img] = jnp.maximum(y2 + xb, 0.0)              # +identity, ReLU


def _fold_bn(gamma, beta, mean, var, conv_bias, eps):
    """Eval-mode BN folded with the conv bias into per-channel scale/shift."""
    scale = gamma / jnp.sqrt(var + eps)
    shift = beta - mean * scale
    return scale, scale * conv_bias + shift


@functools.partial(jax.jit,
                   static_argnames=("images_per_step", "mxu_dtype", "eps"))
def residual_block_pallas(x_nchw,
                          w1_oihw, b1, g1, be1, m1, v1,
                          w2_oihw, b2, g2, be2, m2, v2,
                          *, images_per_step=1, mxu_dtype=jnp.bfloat16,
                          eps=1e-5):
    N, C, H, W = x_nchw.shape
    HW = H * W
    assert N % images_per_step == 0
    assert HW % 128 == 0, "flattened spatial dim should be lane aligned"

    # Fold eval-mode BN into per-output-channel scale/shift, then fold the
    # scale into the conv weight rows so the kernel epilogue is add-only.
    s1, sh1 = _fold_bn(g1, be1, m1, v1, b1, eps)
    s2, sh2 = _fold_bn(g2, be2, m2, v2, b2, eps)

    def prep_w(w_oihw, scale):
        # OIHW -> (kh*kw, C_out, C_in), BN scale folded along C_out, cast for
        # the MXU (bf16 on v6e/v7x; f32 for exact path / v5e).
        w = jnp.transpose(w_oihw, (2, 3, 0, 1)).reshape(9, C, C)
        return (w * scale[None, :, None]).astype(mxu_dtype)

    w1_t = prep_w(w1_oihw, s1)
    w2_t = prep_w(w2_oihw, s2)

    x_flat = x_nchw.reshape(N, C, HW)          # free (contiguous) reshape
    nblk = images_per_step
    grid = (N // nblk,)

    kernel = functools.partial(_residual_block_kernel, width=W)

    out_flat = pl.pallas_call(
        kernel,
        out_shape=jax.ShapeDtypeStruct((N, C, HW), jnp.float32),
        grid_spec=pltpu.PrefetchScalarGridSpec(
            num_scalar_prefetch=0,
            grid=grid,
            in_specs=[
                pl.BlockSpec((nblk, C, HW), lambda n: (n, 0, 0)),
                pl.BlockSpec((9, C, C), lambda n: (0, 0, 0)),
                pl.BlockSpec((C, 1), lambda n: (0, 0)),
                pl.BlockSpec((9, C, C), lambda n: (0, 0, 0)),
                pl.BlockSpec((C, 1), lambda n: (0, 0)),
            ],
            out_specs=pl.BlockSpec((nblk, C, HW), lambda n: (n, 0, 0)),
        ),
        compiler_params=pltpu.CompilerParams(
            dimension_semantics=("parallel",),
            vmem_limit_bytes=32 * 1024 * 1024),
    )(x_flat, w1_t, sh1.reshape(C, 1), w2_t, sh2.reshape(C, 1))

    return out_flat.reshape(N, C, H, W)


def _reference_forward(x, w1, b1, bn1, w2, b2, bn2, eps=1e-5):
    """Pure-JAX NCHW reference mirroring the PyTorch forward in eval mode."""
    dn = ('NCHW', 'OIHW', 'NCHW')

    def bn(y, p):
        g, b, m, v = (t.reshape(1, -1, 1, 1) for t in p)
        return (y - m) / jnp.sqrt(v + eps) * g + b

    out = lax.conv_general_dilated(x, w1, (1, 1), 'SAME',
                                   dimension_numbers=dn,
                                   precision=lax.Precision.HIGHEST)
    out = out + b1.reshape(1, -1, 1, 1)
    out = jnp.maximum(bn(out, bn1), 0.0)
    out = lax.conv_general_dilated(out, w2, (1, 1), 'SAME',
                                   dimension_numbers=dn,
                                   precision=lax.Precision.HIGHEST)
    out = out + b2.reshape(1, -1, 1, 1)
    out = bn(out, bn2)
    return jnp.maximum(out + x, 0.0)


if __name__ == "__main__":
    N, C, H, W = 2, 4, 16, 16   # NCHW, matching the PyTorch module's layout

    key = jax.random.PRNGKey(0)
    ks = jax.random.split(key, 12)

    # Deterministic parameters (shapes match nn.Conv2d(C, C, 3) / BatchNorm2d(C)).
    w1 = jax.random.normal(ks[0], (C, C, 3, 3), jnp.float32) * 0.1
    b1 = jax.random.normal(ks[1], (C,), jnp.float32) * 0.1
    w2 = jax.random.normal(ks[2], (C, C, 3, 3), jnp.float32) * 0.1
    b2 = jax.random.normal(ks[3], (C,), jnp.float32) * 0.1

    g1 = 1.0 + 0.1 * jax.random.normal(ks[4], (C,), jnp.float32)
    be1 = 0.1 * jax.random.normal(ks[5], (C,), jnp.float32)
    m1 = 0.1 * jax.random.normal(ks[6], (C,), jnp.float32)
    v1 = jax.random.uniform(ks[7], (C,), jnp.float32, 0.5, 1.5)

    g2 = 1.0 + 0.1 * jax.random.normal(ks[8], (C,), jnp.float32)
    be2 = 0.1 * jax.random.normal(ks[9], (C,), jnp.float32)
    m2 = 0.1 * jax.random.normal(ks[10], (C,), jnp.float32)
    v2 = jax.random.uniform(ks[11], (C,), jnp.float32, 0.5, 1.5)

    x = jax.random.normal(jax.random.fold_in(key, 7), (N, C, H, W), jnp.float32)

    ref = jax.block_until_ready(_reference_forward(
        x, w1, b1, (g1, be1, m1, v1), w2, b2, (g2, be2, m2, v2)))

    # Exact path (f32 MXU inputs): verifies the shift/mask/layout logic.
    out_f32 = jax.block_until_ready(residual_block_pallas(
        x, w1, b1, g1, be1, m1, v1, w2, b2, g2, be2, m2, v2,
        mxu_dtype=jnp.float32))
    assert out_f32.shape == (N, C, H, W)
    err_f32 = float(jnp.max(jnp.abs(out_f32 - ref)))
    assert err_f32 < 1e-4, err_f32

    # Performance path (bf16 MXU inputs, f32 accumulation -- v6e/v7x MXU).
    # Looser tolerance per the review note: inputs lose mantissa, accumulation
    # stays f32.
    out_bf16 = jax.block_until_ready(residual_block_pallas(
        x, w1, b1, g1, be1, m1, v1, w2, b2, g2, be2, m2, v2,
        mxu_dtype=jnp.bfloat16))
    err_bf16 = float(jnp.max(jnp.abs(out_bf16 - ref)))
    assert err_bf16 < 8e-2, err_bf16

    print("KERNEL_OK")
</pallas_src>

<mosaic_0001>
module attributes {stable_mosaic.version = 11 : i64} {
  func.func @_residual_block_kernel(%arg0: i32, %arg1: memref<1x4x256xf32, #tpu.memory_space<vmem>>, %arg2: memref<9x4x4xf32, #tpu.memory_space<vmem>>, %arg3: memref<4x1xf32, #tpu.memory_space<vmem>>, %arg4: memref<9x4x4xf32, #tpu.memory_space<vmem>>, %arg5: memref<4x1xf32, #tpu.memory_space<vmem>>, %arg6: memref<1x4x256xf32, #tpu.memory_space<vmem>>) attributes {dimension_semantics = [#tpu.dimension_semantics<parallel>], iteration_bounds = array<i64: 2>, scalar_prefetch = 0 : i64, scratch_operands = 0 : i64, tpu.core_type = #tpu.core_type<tc>, window_params = [{transform_indices = @transform_0, window_bounds = array<i64: 1, 4, 256>}, {pipeline_mode = #tpu.pipeline_mode<synchronous>, transform_indices = @transform_1, window_bounds = array<i64: 9, 4, 4>}, {pipeline_mode = #tpu.pipeline_mode<synchronous>, transform_indices = @transform_2, window_bounds = array<i64: 4, 1>}, {pipeline_mode = #tpu.pipeline_mode<synchronous>, transform_indices = @transform_3, window_bounds = array<i64: 9, 4, 4>}, {pipeline_mode = #tpu.pipeline_mode<synchronous>, transform_indices = @transform_4, window_bounds = array<i64: 4, 1>}, {transform_indices = @transform_5, window_bounds = array<i64: 1, 4, 256>}]} {
    %0 = tpu.iota {dimensions = array<i32: 1>} : vector<4x256xi32>
    %c16_i32 = arith.constant 16 : i32
    %c0_i32 = arith.constant 0 : i32
    %1 = arith.cmpi eq, %c16_i32, %c0_i32 : i32
    %c1_i32 = arith.constant 1 : i32
    %2 = arith.select %1, %c1_i32, %c16_i32 : i32
    %3 = vector.broadcast %2 : i32 to vector<4x256xi32>
    %4 = arith.remsi %0, %3 : vector<4x256xi32>
    %c0_i32_0 = arith.constant 0 : i32
    %5 = vector.broadcast %c0_i32_0 : i32 to vector<4x256xi32>
    %6 = arith.cmpi ne, %4, %5 : vector<4x256xi32>
    %c0_i32_1 = arith.constant 0 : i32
    %7 = vector.broadcast %c0_i32_1 : i32 to vector<4x256xi32>
    %8 = arith.cmpi slt, %4, %7 : vector<4x256xi32>
    %c0_i32_2 = arith.constant 0 : i32
    %9 = arith.cmpi slt, %2, %c0_i32_2 : i32
    %10 = vector.broadcast %9 : i1 to vector<4x256xi1>
    %11 = vector.broadcast %10 : vector<4x256xi1> to vector<4x256xi1>
    %12 = arith.xori %8, %11 : vector<4x256xi1>
    %13 = arith.andi %12, %6 : vector<4x256xi1>
    %14 = vector.broadcast %2 : i32 to vector<4x256xi32>
    %15 = arith.addi %4, %14 : vector<4x256xi32>
    %16 = arith.select %13, %15, %4 : vector<4x256xi1>, vector<4x256xi32>
    %c1_i32_3 = arith.constant 1 : i32
    %17 = vector.broadcast %c1_i32_3 : i32 to vector<4x256xi32>
    %18 = arith.cmpi sge, %16, %17 : vector<4x256xi32>
    %c15_i32 = arith.constant 15 : i32
    %19 = vector.broadcast %c15_i32 : i32 to vector<4x256xi32>
    %20 = arith.cmpi slt, %16, %19 : vector<4x256xi32>
    %c0 = arith.constant 0 : index
    %c0_4 = arith.constant 0 : index
    %c0_5 = arith.constant 0 : index
    %21 = vector.load %arg1[%c0, %c0_4, %c0_5] : memref<1x4x256xf32, #tpu.memory_space<vmem>>, vector<1x4x256xf32>
    %22 = vector.shape_cast %21 : vector<1x4x256xf32> to vector<4x256xf32>
    %cst = arith.constant 0.000000e+00 : f32
    %23 = vector.broadcast %cst : f32 to vector<4x17xf32>
    %24 = vector.extract_strided_slice %22 {offsets = [0, 0], sizes = [4, 239], strides = [1, 1]} : vector<4x256xf32> to vector<4x239xf32>
    %25 = tpu.concatenate %23, %24 in 1 : vector<4x17xf32>, vector<4x239xf32> -> vector<4x256xf32>
    %cst_6 = arith.constant 0.000000e+00 : f32
    %26 = vector.broadcast %cst_6 : f32 to vector<4x256xf32>
    %27 = arith.select %18, %25, %26 : vector<4x256xi1>, vector<4x256xf32>
    %c0_7 = arith.constant 0 : index
    %c0_8 = arith.constant 0 : index
    %c0_9 = arith.constant 0 : index
    %28 = vector.load %arg2[%c0_7, %c0_8, %c0_9] : memref<9x4x4xf32, #tpu.memory_space<vmem>>, vector<1x4x4xf32>
    %29 = vector.shape_cast %28 : vector<1x4x4xf32> to vector<4x4xf32>
    %cst_10 = arith.constant dense<0.000000e+00> : vector<4x256xf32>
    %30 = tpu.matmul %29, %27, %cst_10 {dimension_numbers = #tpu.dot_dimension_numbers<[1], [0], [0], [1], [0, 0, 1, 1], [], []>} : vector<4x4xf32>, vector<4x256xf32>, vector<4x256xf32> -> vector<4x256xf32>
    %cst_11 = arith.constant 0.000000e+00 : f32
    %31 = vector.broadcast %cst_11 : f32 to vector<4x16xf32>
    %32 = vector.extract_strided_slice %22 {offsets = [0, 0], sizes = [4, 240], strides = [1, 1]} : vector<4x256xf32> to vector<4x240xf32>
    %33 = tpu.concatenate %31, %32 in 1 : vector<4x16xf32>, vector<4x240xf32> -> vector<4x256xf32>
    %c1 = arith.constant 1 : index
    %c0_12 = arith.constant 0 : index
    %c0_13 = arith.constant 0 : index
    %34 = vector.load %arg2[%c1, %c0_12, %c0_13] : memref<9x4x4xf32, #tpu.memory_space<vmem>>, vector<1x4x4xf32>
    %35 = vector.shape_cast %34 : vector<1x4x4xf32> to vector<4x4xf32>
    %cst_14 = arith.constant dense<0.000000e+00> : vector<4x256xf32>
    %36 = tpu.matmul %35, %33, %cst_14 {dimension_numbers = #tpu.dot_dimension_numbers<[1], [0], [0], [1], [0, 0, 1, 1], [], []>} : vector<4x4xf32>, vector<4x256xf32>, vector<4x256xf32> -> vector<4x256xf32>
    %37 = arith.addf %30, %36 : vector<4x256xf32>
    %cst_15 = arith.constant 0.000000e+00 : f32
    %38 = vector.broadcast %cst_15 : f32 to vector<4x15xf32>
    %39 = vector.extract_strided_slice %22 {offsets = [0, 0], sizes = [4, 241], strides = [1, 1]} : vector<4x256xf32> to vector<4x241xf32>
    %40 = tpu.concatenate %38, %39 in 1 : vector<4x15xf32>, vector<4x241xf32> -> vector<4x256xf32>
    %cst_16 = arith.constant 0.000000e+00 : f32
    %41 = vector.broadcast %cst_16 : f32 to vector<4x256xf32>
    %42 = arith.select %20, %40, %41 : vector<4x256xi1>, vector<4x256xf32>
    %c2 = arith.constant 2 : index
    %c0_17 = arith.constant 0 : index
    %c0_18 = arith.constant 0 : index
    %43 = vector.load %arg2[%c2, %c0_17, %c0_18] : memref<9x4x4xf32, #tpu.memory_space<vmem>>, vector<1x4x4xf32>
    %44 = vector.shape_cast %43 : vector<1x4x4xf32> to vector<4x4xf32>
    %cst_19 = arith.constant dense<0.000000e+00> : vector<4x256xf32>
    %45 = tpu.matmul %44, %42, %cst_19 {dimension_numbers = #tpu.dot_dimension_numbers<[1], [0], [0], [1], [0, 0, 1, 1], [], []>} : vector<4x4xf32>, vector<4x256xf32>, vector<4x256xf32> -> vector<4x256xf32>
    %46 = arith.addf %37, %45 : vector<4x256xf32>
    %cst_20 = arith.constant 0.000000e+00 : f32
    %47 = vector.broadcast %cst_20 : f32 to vector<4x1xf32>
    %48 = vector.extract_strided_slice %22 {offsets = [0, 0], sizes = [4, 255], strides = [1, 1]} : vector<4x256xf32> to vector<4x255xf32>
    %49 = tpu.concatenate %47, %48 in 1 : vector<4x1xf32>, vector<4x255xf32> -> vector<4x256xf32>
    %cst_21 = arith.constant 0.000000e+00 : f32
    %50 = vector.broadcast %cst_21 : f32 to vector<4x256xf32>
    %51 = arith.select %18, %49, %50 : vector<4x256xi1>, vector<4x256xf32>
    %c3 = arith.constant 3 : index
    %c0_22 = arith.constant 0 : index
    %c0_23 = arith.constant 0 : index
    %52 = vector.load %arg2[%c3, %c0_22, %c0_23] : memref<9x4x4xf32, #tpu.memory_space<vmem>>, vector<1x4x4xf32>
    %53 = vector.shape_cast %52 : vector<1x4x4xf32> to vector<4x4xf32>
    %cst_24 = arith.constant dense<0.000000e+00> : vector<4x256xf32>
    %54 = tpu.matmul %53, %51, %cst_24 {dimension_numbers = #tpu.dot_dimension_numbers<[1], [0], [0], [1], [0, 0, 1, 1], [], []>} : vector<4x4xf32>, vector<4x256xf32>, vector<4x256xf32> -> vector<4x256xf32>
    %55 = arith.addf %46, %54 : vector<4x256xf32>
    %c4 = arith.constant 4 : index
    %c0_25 = arith.constant 0 : index
    %c0_26 = arith.constant 0 : index
    %56 = vector.load %arg2[%c4, %c0_25, %c0_26] : memref<9x4x4xf32, #tpu.memory_space<vmem>>, vector<1x4x4xf32>
    %57 = vector.shape_cast %56 : vector<1x4x4xf32> to vector<4x4xf32>
    %cst_27 = arith.constant dense<0.000000e+00> : vector<4x256xf32>
    %58 = tpu.matmul %57, %22, %cst_27 {dimension_numbers = #tpu.dot_dimension_numbers<[1], [0], [0], [1], [0, 0, 1, 1], [], []>} : vector<4x4xf32>, vector<4x256xf32>, vector<4x256xf32> -> vector<4x256xf32>
    %59 = arith.addf %55, %58 : vector<4x256xf32>
    %cst_28 = arith.constant 0.000000e+00 : f32
    %60 = vector.broadcast %cst_28 : f32 to vector<4x1xf32>
    %61 = vector.extract_strided_slice %22 {offsets = [0, 1], sizes = [4, 255], strides = [1, 1]} : vector<4x256xf32> to vector<4x255xf32>
    %62 = tpu.concatenate %61, %60 in 1 : vector<4x255xf32>, vector<4x1xf32> -> vector<4x256xf32>
    %cst_29 = arith.constant 0.000000e+00 : f32
    %63 = vector.broadcast %cst_29 : f32 to vector<4x256xf32>
    %64 = arith.select %20, %62, %63 : vector<4x256xi1>, vector<4x256xf32>
    %c5 = arith.constant 5 : index
    %c0_30 = arith.constant 0 : index
    %c0_31 = arith.constant 0 : index
    %65 = vector.load %arg2[%c5, %c0_30, %c0_31] : memref<9x4x4xf32, #tpu.memory_space<vmem>>, vector<1x4x4xf32>
    %66 = vector.shape_cast %65 : vector<1x4x4xf32> to vector<4x4xf32>
    %cst_32 = arith.constant dense<0.000000e+00> : vector<4x256xf32>
    %67 = tpu.matmul %66, %64, %cst_32 {dimension_numbers = #tpu.dot_dimension_numbers<[1], [0], [0], [1], [0, 0, 1, 1], [], []>} : vector<4x4xf32>, vector<4x256xf32>, vector<4x256xf32> -> vector<4x256xf32>
    %68 = arith.addf %59, %67 : vector<4x256xf32>
    %cst_33 = arith.constant 0.000000e+00 : f32
    %69 = vector.broadcast %cst_33 : f32 to vector<4x15xf32>
    %70 = vector.extract_strided_slice %22 {offsets = [0, 15], sizes = [4, 241], strides = [1, 1]} : vector<4x256xf32> to vector<4x241xf32>
    %71 = tpu.concatenate %70, %69 in 1 : vector<4x241xf32>, vector<4x15xf32> -> vector<4x256xf32>
    %cst_34 = arith.constant 0.000000e+00 : f32
    %72 = vector.broadcast %cst_34 : f32 to vector<4x256xf32>
    %73 = arith.select %18, %71, %72 : vector<4x256xi1>, vector<4x256xf32>
    %c6 = arith.constant 6 : index
    %c0_35 = arith.constant 0 : index
    %c0_36 = arith.constant 0 : index
    %74 = vector.load %arg2[%c6, %c0_35, %c0_36] : memref<9x4x4xf32, #tpu.memory_space<vmem>>, vector<1x4x4xf32>
    %75 = vector.shape_cast %74 : vector<1x4x4xf32> to vector<4x4xf32>
    %cst_37 = arith.constant dense<0.000000e+00> : vector<4x256xf32>
    %76 = tpu.matmul %75, %73, %cst_37 {dimension_numbers = #tpu.dot_dimension_numbers<[1], [0], [0], [1], [0, 0, 1, 1], [], []>} : vector<4x4xf32>, vector<4x256xf32>, vector<4x256xf32> -> vector<4x256xf32>
    %77 = arith.addf %68, %76 : vector<4x256xf32>
    %cst_38 = arith.constant 0.000000e+00 : f32
    %78 = vector.broadcast %cst_38 : f32 to vector<4x16xf32>
    %79 = vector.extract_strided_slice %22 {offsets = [0, 16], sizes = [4, 240], strides = [1, 1]} : vector<4x256xf32> to vector<4x240xf32>
    %80 = tpu.concatenate %79, %78 in 1 : vector<4x240xf32>, vector<4x16xf32> -> vector<4x256xf32>
    %c7 = arith.constant 7 : index
    %c0_39 = arith.constant 0 : index
    %c0_40 = arith.constant 0 : index
    %81 = vector.load %arg2[%c7, %c0_39, %c0_40] : memref<9x4x4xf32, #tpu.memory_space<vmem>>, vector<1x4x4xf32>
    %82 = vector.shape_cast %81 : vector<1x4x4xf32> to vector<4x4xf32>
    %cst_41 = arith.constant dense<0.000000e+00> : vector<4x256xf32>
    %83 = tpu.matmul %82, %80, %cst_41 {dimension_numbers = #tpu.dot_dimension_numbers<[1], [0], [0], [1], [0, 0, 1, 1], [], []>} : vector<4x4xf32>, vector<4x256xf32>, vector<4x256xf32> -> vector<4x256xf32>
    %84 = arith.addf %77, %83 : vector<4x256xf32>
    %cst_42 = arith.constant 0.000000e+00 : f32
    %85 = vector.broadcast %cst_42 : f32 to vector<4x17xf32>
    %86 = vector.extract_strided_slice %22 {offsets = [0, 17], sizes = [4, 239], strides = [1, 1]} : vector<4x256xf32> to vector<4x239xf32>
    %87 = tpu.concatenate %86, %85 in 1 : vector<4x239xf32>, vector<4x17xf32> -> vector<4x256xf32>
    %cst_43 = arith.constant 0.000000e+00 : f32
    %88 = vector.broadcast %cst_43 : f32 to vector<4x256xf32>
    %89 = arith.select %20, %87, %88 : vector<4x256xi1>, vector<4x256xf32>
    %c8 = arith.constant 8 : index
    %c0_44 = arith.constant 0 : index
    %c0_45 = arith.constant 0 : index
    %90 = vector.load %arg2[%c8, %c0_44, %c0_45] : memref<9x4x4xf32, #tpu.memory_space<vmem>>, vector<1x4x4xf32>
    %91 = vector.shape_cast %90 : vector<1x4x4xf32> to vector<4x4xf32>
    %cst_46 = arith.constant dense<0.000000e+00> : vector<4x256xf32>
    %92 = tpu.matmul %91, %89, %cst_46 {dimension_numbers = #tpu.dot_dimension_numbers<[1], [0], [0], [1], [0, 0, 1, 1], [], []>} : vector<4x4xf32>, vector<4x256xf32>, vector<4x256xf32> -> vector<4x256xf32>
    %93 = arith.addf %84, %92 : vector<4x256xf32>
    %c0_47 = arith.constant 0 : index
    %c0_48 = arith.constant 0 : index
    %94 = vector.load %arg3[%c0_47, %c0_48] : memref<4x1xf32, #tpu.memory_space<vmem>>, vector<4x1xf32>
    %95 = vector.broadcast %94 : vector<4x1xf32> to vector<4x256xf32>
    %96 = arith.addf %93, %95 : vector<4x256xf32>
    %cst_49 = arith.constant 0.000000e+00 : f32
    %97 = vector.broadcast %cst_49 : f32 to vector<4x256xf32>
    %98 = arith.maximumf %96, %97 : vector<4x256xf32>
    %cst_50 = arith.constant 0.000000e+00 : f32
    %99 = vector.broadcast %cst_50 : f32 to vector<4x17xf32>
    %100 = vector.extract_strided_slice %98 {offsets = [0, 0], sizes = [4, 239], strides = [1, 1]} : vector<4x256xf32> to vector<4x239xf32>
    %101 = tpu.concatenate %99, %100 in 1 : vector<4x17xf32>, vector<4x239xf32> -> vector<4x256xf32>
    %cst_51 = arith.constant 0.000000e+00 : f32
    %102 = vector.broadcast %cst_51 : f32 to vector<4x256xf32>
    %103 = arith.select %18, %101, %102 : vector<4x256xi1>, vector<4x256xf32>
    %c0_52 = arith.constant 0 : index
    %c0_53 = arith.constant 0 : index
    %c0_54 = arith.constant 0 : index
    %104 = vector.load %arg4[%c0_52, %c0_53, %c0_54] : memref<9x4x4xf32, #tpu.memory_space<vmem>>, vector<1x4x4xf32>
    %105 = vector.shape_cast %104 : vector<1x4x4xf32> to vector<4x4xf32>
    %cst_55 = arith.constant dense<0.000000e+00> : vector<4x256xf32>
    %106 = tpu.matmul %105, %103, %cst_55 {dimension_numbers = #tpu.dot_dimension_numbers<[1], [0], [0], [1], [0, 0, 1, 1], [], []>} : vector<4x4xf32>, vector<4x256xf32>, vector<4x256xf32> -> vector<4x256xf32>
    %cst_56 = arith.constant 0.000000e+00 : f32
    %107 = vector.broadcast %cst_56 : f32 to vector<4x16xf32>
    %108 = vector.extract_strided_slice %98 {offsets = [0, 0], sizes = [4, 240], strides = [1, 1]} : vector<4x256xf32> to vector<4x240xf32>
    %109 = tpu.concatenate %107, %108 in 1 : vector<4x16xf32>, vector<4x240xf32> -> vector<4x256xf32>
    %c1_57 = arith.constant 1 : index
    %c0_58 = arith.constant 0 : index
    %c0_59 = arith.constant 0 : index
    %110 = vector.load %arg4[%c1_57, %c0_58, %c0_59] : memref<9x4x4xf32, #tpu.memory_space<vmem>>, vector<1x4x4xf32>
    %111 = vector.shape_cast %110 : vector<1x4x4xf32> to vector<4x4xf32>
    %cst_60 = arith.constant dense<0.000000e+00> : vector<4x256xf32>
    %112 = tpu.matmul %111, %109, %cst_60 {dimension_numbers = #tpu.dot_dimension_numbers<[1], [0], [0], [1], [0, 0, 1, 1], [], []>} : vector<4x4xf32>, vector<4x256xf32>, vector<4x256xf32> -> vector<4x256xf32>
    %113 = arith.addf %106, %112 : vector<4x256xf32>
    %cst_61 = arith.constant 0.000000e+00 : f32
    %114 = vector.broadcast %cst_61 : f32 to vector<4x15xf32>
    %115 = vector.extract_strided_slice %98 {offsets = [0, 0], sizes = [4, 241], strides = [1, 1]} : vector<4x256xf32> to vector<4x241xf32>
    %116 = tpu.concatenate %114, %115 in 1 : vector<4x15xf32>, vector<4x241xf32> -> vector<4x256xf32>
    %cst_62 = arith.constant 0.000000e+00 : f32
    %117 = vector.broadcast %cst_62 : f32 to vector<4x256xf32>
    %118 = arith.select %20, %116, %117 : vector<4x256xi1>, vector<4x256xf32>
    %c2_63 = arith.constant 2 : index
    %c0_64 = arith.constant 0 : index
    %c0_65 = arith.constant 0 : index
    %119 = vector.load %arg4[%c2_63, %c0_64, %c0_65] : memref<9x4x4xf32, #tpu.memory_space<vmem>>, vector<1x4x4xf32>
    %120 = vector.shape_cast %119 : vector<1x4x4xf32> to vector<4x4xf32>
    %cst_66 = arith.constant dense<0.000000e+00> : vector<4x256xf32>
    %121 = tpu.matmul %120, %118, %cst_66 {dimension_numbers = #tpu.dot_dimension_numbers<[1], [0], [0], [1], [0, 0, 1, 1], [], []>} : vector<4x4xf32>, vector<4x256xf32>, vector<4x256xf32> -> vector<4x256xf32>
    %122 = arith.addf %113, %121 : vector<4x256xf32>
    %cst_67 = arith.constant 0.000000e+00 : f32
    %123 = vector.broadcast %cst_67 : f32 to vector<4x1xf32>
    %124 = vector.extract_strided_slice %98 {offsets = [0, 0], sizes = [4, 255], strides = [1, 1]} : vector<4x256xf32> to vector<4x255xf32>
    %125 = tpu.concatenate %123, %124 in 1 : vector<4x1xf32>, vector<4x255xf32> -> vector<4x256xf32>
    %cst_68 = arith.constant 0.000000e+00 : f32
    %126 = vector.broadcast %cst_68 : f32 to vector<4x256xf32>
    %127 = arith.select %18, %125, %126 : vector<4x256xi1>, vector<4x256xf32>
    %c3_69 = arith.constant 3 : index
    %c0_70 = arith.constant 0 : index
    %c0_71 = arith.constant 0 : index
    %128 = vector.load %arg4[%c3_69, %c0_70, %c0_71] : memref<9x4x4xf32, #tpu.memory_space<vmem>>, vector<1x4x4xf32>
    %129 = vector.shape_cast %128 : vector<1x4x4xf32> to vector<4x4xf32>
    %cst_72 = arith.constant dense<0.000000e+00> : vector<4x256xf32>
    %130 = tpu.matmul %129, %127, %cst_72 {dimension_numbers = #tpu.dot_dimension_numbers<[1], [0], [0], [1], [0, 0, 1, 1], [], []>} : vector<4x4xf32>, vector<4x256xf32>, vector<4x256xf32> -> vector<4x256xf32>
    %131 = arith.addf %122, %130 : vector<4x256xf32>
    %c4_73 = arith.constant 4 : index
    %c0_74 = arith.constant 0 : index
    %c0_75 = arith.constant 0 : index
    %132 = vector.load %arg4[%c4_73, %c0_74, %c0_75] : memref<9x4x4xf32, #tpu.memory_space<vmem>>, vector<1x4x4xf32>
    %133 = vector.shape_cast %132 : vector<1x4x4xf32> to vector<4x4xf32>
    %cst_76 = arith.constant dense<0.000000e+00> : vector<4x256xf32>
    %134 = tpu.matmul %133, %98, %cst_76 {dimension_numbers = #tpu.dot_dimension_numbers<[1], [0], [0], [1], [0, 0, 1, 1], [], []>} : vector<4x4xf32>, vector<4x256xf32>, vector<4x256xf32> -> vector<4x256xf32>
    %135 = arith.addf %131, %134 : vector<4x256xf32>
    %cst_77 = arith.constant 0.000000e+00 : f32
    %136 = vector.broadcast %cst_77 : f32 to vector<4x1xf32>
    %137 = vector.extract_strided_slice %98 {offsets = [0, 1], sizes = [4, 255], strides = [1, 1]} : vector<4x256xf32> to vector<4x255xf32>
    %138 = tpu.concatenate %137, %136 in 1 : vector<4x255xf32>, vector<4x1xf32> -> vector<4x256xf32>
    %cst_78 = arith.constant 0.000000e+00 : f32
    %139 = vector.broadcast %cst_78 : f32 to vector<4x256xf32>
    %140 = arith.select %20, %138, %139 : vector<4x256xi1>, vector<4x256xf32>
    %c5_79 = arith.constant 5 : index
    %c0_80 = arith.constant 0 : index
    %c0_81 = arith.constant 0 : index
    %141 = vector.load %arg4[%c5_79, %c0_80, %c0_81] : memref<9x4x4xf32, #tpu.memory_space<vmem>>, vector<1x4x4xf32>
    %142 = vector.shape_cast %141 : vector<1x4x4xf32> to vector<4x4xf32>
    %cst_82 = arith.constant dense<0.000000e+00> : vector<4x256xf32>
    %143 = tpu.matmul %142, %140, %cst_82 {dimension_numbers = #tpu.dot_dimension_numbers<[1], [0], [0], [1], [0, 0, 1, 1], [], []>} : vector<4x4xf32>, vector<4x256xf32>, vector<4x256xf32> -> vector<4x256xf32>
    %144 = arith.addf %135, %143 : vector<4x256xf32>
    %cst_83 = arith.constant 0.000000e+00 : f32
    %145 = vector.broadcast %cst_83 : f32 to vector<4x15xf32>
    %146 = vector.extract_strided_slice %98 {offsets = [0, 15], sizes = [4, 241], strides = [1, 1]} : vector<4x256xf32> to vector<4x241xf32>
    %147 = tpu.concatenate %146, %145 in 1 : vector<4x241xf32>, vector<4x15xf32> -> vector<4x256xf32>
    %cst_84 = arith.constant 0.000000e+00 : f32
    %148 = vector.broadcast %cst_84 : f32 to vector<4x256xf32>
    %149 = arith.select %18, %147, %148 : vector<4x256xi1>, vector<4x256xf32>
    %c6_85 = arith.constant 6 : index
    %c0_86 = arith.constant 0 : index
    %c0_87 = arith.constant 0 : index
    %150 = vector.load %arg4[%c6_85, %c0_86, %c0_87] : memref<9x4x4xf32, #tpu.memory_space<vmem>>, vector<1x4x4xf32>
    %151 = vector.shape_cast %150 : vector<1x4x4xf32> to vector<4x4xf32>
    %cst_88 = arith.constant dense<0.000000e+00> : vector<4x256xf32>
    %152 = tpu.matmul %151, %149, %cst_88 {dimension_numbers = #tpu.dot_dimension_numbers<[1], [0], [0], [1], [0, 0, 1, 1], [], []>} : vector<4x4xf32>, vector<4x256xf32>, vector<4x256xf32> -> vector<4x256xf32>
    %153 = arith.addf %144, %152 : vector<4x256xf32>
    %cst_89 = arith.constant 0.000000e+00 : f32
    %154 = vector.broadcast %cst_89 : f32 to vector<4x16xf32>
    %155 = vector.extract_strided_slice %98 {offsets = [0, 16], sizes = [4, 240], strides = [1, 1]} : vector<4x256xf32> to vector<4x240xf32>
    %156 = tpu.concatenate %155, %154 in 1 : vector<4x240xf32>, vector<4x16xf32> -> vector<4x256xf32>
    %c7_90 = arith.constant 7 : index
    %c0_91 = arith.constant 0 : index
    %c0_92 = arith.constant 0 : index
    %157 = vector.load %arg4[%c7_90, %c0_91, %c0_92] : memref<9x4x4xf32, #tpu.memory_space<vmem>>, vector<1x4x4xf32>
    %158 = vector.shape_cast %157 : vector<1x4x4xf32> to vector<4x4xf32>
    %cst_93 = arith.constant dense<0.000000e+00> : vector<4x256xf32>
    %159 = tpu.matmul %158, %156, %cst_93 {dimension_numbers = #tpu.dot_dimension_numbers<[1], [0], [0], [1], [0, 0, 1, 1], [], []>} : vector<4x4xf32>, vector<4x256xf32>, vector<4x256xf32> -> vector<4x256xf32>
    %160 = arith.addf %153, %159 : vector<4x256xf32>
    %cst_94 = arith.constant 0.000000e+00 : f32
    %161 = vector.broadcast %cst_94 : f32 to vector<4x17xf32>
    %162 = vector.extract_strided_slice %98 {offsets = [0, 17], sizes = [4, 239], strides = [1, 1]} : vector<4x256xf32> to vector<4x239xf32>
    %163 = tpu.concatenate %162, %161 in 1 : vector<4x239xf32>, vector<4x17xf32> -> vector<4x256xf32>
    %cst_95 = arith.constant 0.000000e+00 : f32
    %164 = vector.broadcast %cst_95 : f32 to vector<4x256xf32>
    %165 = arith.select %20, %163, %164 : vector<4x256xi1>, vector<4x256xf32>
    %c8_96 = arith.constant 8 : index
    %c0_97 = arith.constant 0 : index
    %c0_98 = arith.constant 0 : index
    %166 = vector.load %arg4[%c8_96, %c0_97, %c0_98] : memref<9x4x4xf32, #tpu.memory_space<vmem>>, vector<1x4x4xf32>
    %167 = vector.shape_cast %166 : vector<1x4x4xf32> to vector<4x4xf32>
    %cst_99 = arith.constant dense<0.000000e+00> : vector<4x256xf32>
    %168 = tpu.matmul %167, %165, %cst_99 {dimension_numbers = #tpu.dot_dimension_numbers<[1], [0], [0], [1], [0, 0, 1, 1], [], []>} : vector<4x4xf32>, vector<4x256xf32>, vector<4x256xf32> -> vector<4x256xf32>
    %169 = arith.addf %160, %168 : vector<4x256xf32>
    %c0_100 = arith.constant 0 : index
    %c0_101 = arith.constant 0 : index
    %170 = vector.load %arg5[%c0_100, %c0_101] : memref<4x1xf32, #tpu.memory_space<vmem>>, vector<4x1xf32>
    %171 = vector.broadcast %170 : vector<4x1xf32> to vector<4x256xf32>
    %172 = arith.addf %169, %171 : vector<4x256xf32>
    %173 = arith.addf %172, %22 : vector<4x256xf32>
    %cst_102 = arith.constant 0.000000e+00 : f32
    %174 = vector.broadcast %cst_102 : f32 to vector<4x256xf32>
    %175 = arith.maximumf %173, %174 : vector<4x256xf32>
    %c0_103 = arith.constant 0 : index
    %c0_104 = arith.constant 0 : index
    %c0_105 = arith.constant 0 : index
    %176 = vector.load %arg6[%c0_103, %c0_104, %c0_105] : memref<1x4x256xf32, #tpu.memory_space<vmem>>, vector<1x4x256xf32>
    %177 = vector.shape_cast %176 : vector<1x4x256xf32> to vector<4x256xf32>
    %178 = vector.shape_cast %175 : vector<4x256xf32> to vector<1x4x256xf32>
    tpu.vector_store %arg6[%c0_103, %c0_104, %c0_105], %178 {strides = array<i32>} : memref<1x4x256xf32, #tpu.memory_space<vmem>>, vector<1x4x256xf32>,
    return
  }
  func.func @transform_0(%arg0: i32) -> (i32, i32, i32) {
    %c0_i32 = arith.constant 0 : i32
    %c0_i32_0 = arith.constant 0 : i32
    %c0_i32_1 = arith.constant 0 : i32
    return %arg0, %c0_i32, %c0_i32_0 : i32, i32, i32
  }
  func.func @transform_1(%arg0: i32) -> (i32, i32, i32) {
    %c0_i32 = arith.constant 0 : i32
    %c0_i32_0 = arith.constant 0 : i32
    %c0_i32_1 = arith.constant 0 : i32
    %c0_i32_2 = arith.constant 0 : i32
    return %c0_i32, %c0_i32_0, %c0_i32_1 : i32, i32, i32
  }
  func.func @transform_2(%arg0: i32) -> (i32, i32) {
    %c0_i32 = arith.constant 0 : i32
    %c0_i32_0 = arith.constant 0 : i32
    %c0_i32_1 = arith.constant 0 : i32
    return %c0_i32, %c0_i32_0 : i32, i32
  }
  func.func @transform_3(%arg0: i32) -> (i32, i32, i32) {
    %c0_i32 = arith.constant 0 : i32
    %c0_i32_0 = arith.constant 0 : i32
    %c0_i32_1 = arith.constant 0 : i32
    %c0_i32_2 = arith.constant 0 : i32
    return %c0_i32, %c0_i32_0, %c0_i32_1 : i32, i32, i32
  }
  func.func @transform_4(%arg0: i32) -> (i32, i32) {
    %c0_i32 = arith.constant 0 : i32
    %c0_i32_0 = arith.constant 0 : i32
    %c0_i32_1 = arith.constant 0 : i32
    return %c0_i32, %c0_i32_0 : i32, i32
  }
  func.func @transform_5(%arg0: i32) -> (i32, i32, i32) {
    %c0_i32 = arith.constant 0 : i32
    %c0_i32_0 = arith.constant 0 : i32
    %c0_i32_1 = arith.constant 0 : i32
    return %arg0, %c0_i32, %c0_i32_0 : i32, i32, i32
  }
}

</mosaic_0001>

<llo_original>
// kernel: residual_block_pallas.1
$region0: #{residual_block_pallas.1}
  #allocation0 [shape = 'u32[]', space=smem, size = 0x4, offset = 0x4, fixed_abs, tag = 'smem constant byte address 0x4 - core index']
  #allocation1 [shape = 'u32[72,128]{1,0:T(1,128)}', space=vmem, size = 0x9000, scoped, tag = 'internal scratch']
  %s0 = inlined_call_operand.vmem [shape: f32[2,4,256], index: 0, kind: input, shape index: {}]
  %s1 = inlined_call_operand.vmem [shape: f32[9,4,4], index: 1, kind: input, shape index: {}]
  %s2 = inlined_call_operand.vmem [shape: f32[4,1], index: 2, kind: input, shape index: {}]
  %s3 = inlined_call_operand.vmem [shape: f32[9,4,4], index: 3, kind: input, shape index: {}]
  %s4 = inlined_call_operand.vmem [shape: f32[4,1], index: 4, kind: input, shape index: {}]
  %s5 = inlined_call_operand.vmem [shape: f32[2,4,256], index: 5, kind: output, shape index: {}]
  %s6 = sld [smem:[#allocation0]]
  $region53: #{residual_block_pallas.1} parent=0
    _
  %s8 = ssub.s32 1, %s6
  %s9 = scalar_select 0, %s8, %s6
  loop: start=0, step=1, limit=4
  $region2: #{residual_block_pallas.1} parent=0 // loop_pre_header
    _
  $region3: #{residual_block_pallas.1} parent=0 // loop_header
    %s11 = sphi 0, %s15
    %p12 = scmp.ge.s32.totalorder %s11, 4
    %s21 = sphi 0, %s23
    %s24 = sphi 0, %s21
    %s25 = sphi 0, %s24
    %s41 = sphi 0, %s25
    %s45 = sphi 0, %s45
    %s47 = sphi 0, %s45
    %s48 = sphi 0, %s47
    %s62 = sphi 0, %s48
    %s66 = sphi 0, %s66
    %s68 = sphi 0, %s66
    %s69 = sphi 0, %s68
    %s83 = sphi 0, %s69
    %s87 = sphi 0, %s87
    %s89 = sphi 0, %s87
    %s90 = sphi 0, %s89
    %s104 = sphi 0, %s90
    %s108 = sphi 0, %s108
    %s110 = sphi 0, %s108
    %s111 = sphi 0, %s110
    %s125 = sphi 0, %s111
    %s131 = sphi 0, %s133
    %s134 = sphi 0, %s131
    %s135 = sphi 0, %s134
    %s151 = sphi 0, %s135
  $region4: #{residual_block_pallas.1} parent=0 // loop_header_branch
    %14 = sbr.rel (%p12) target = $region8
  $region5: #{residual_block_pallas.1} parent=0 // loop_body
    %s16 = ssub.s32 %s11, 1
    %s17 = ssub.s32 %s11, 2
    %s18 = sadd.s32 %s11, 1
    %s19 = ssub.s32 %s11, %s18
    %p20 = scmp.eq.s32.totalorder %s19, 0
    %s22 = sadd.s32 %s21, 1
    %s23 = scalar_select %p20, %s21, %s22
    %p26 = pneg %p20
    %p27 = scmp.eq.s32.totalorder %s11, 1
    %p28 = por %p26, %p27
    %p29 = scmp.ne.s32.totalorder %s21, %s24
    %p30 = scmp.eq.s32.totalorder %s11, 0
    %p31 = por %p29, %p30
    %p32 = scmp.ne.s32.totalorder %s21, %s24
    %p33 = scmp.eq.s32.totalorder %s16, 1
    %p34 = por %p32, %p33
    %p35 = scmp.ne.s32.totalorder %s24, %s25
    %p36 = scmp.eq.s32.totalorder %s16, 0
    %p37 = por %p35, %p36
    %p38 = scmp.ne.s32.totalorder %s24, %s25
    %p39 = scmp.eq.s32.totalorder %s17, 1
    %p40 = por %p38, %p39
    %p42 = scmp.ne.s32.totalorder %s25, %s41
    %p43 = scmp.eq.s32.totalorder %s17, 0
    %p44 = por %p42, %p43
    %s46 = sadd.s32 %s45, 1
    %p49 = scmp.eq.s32.totalorder %s11, 1
    %p50 = scmp.ne.s32.totalorder %s45, %s47
    %p51 = scmp.eq.s32.totalorder %s11, 0
    %p52 = por %p50, %p51
    %p53 = scmp.ne.s32.totalorder %s45, %s47
    %p54 = scmp.eq.s32.totalorder %s16, 1
    %p55 = por %p53, %p54
    %p56 = scmp.ne.s32.totalorder %s47, %s48
    %p57 = scmp.eq.s32.totalorder %s16, 0
    %p58 = por %p56, %p57
    %p59 = scmp.ne.s32.totalorder %s47, %s48
    %p60 = scmp.eq.s32.totalorder %s17, 1
    %p61 = por %p59, %p60
    %p63 = scmp.ne.s32.totalorder %s48, %s62
    %p64 = scmp.eq.s32.totalorder %s17, 0
    %p65 = por %p63, %p64
    %s67 = sadd.s32 %s66, 1
    %p70 = scmp.eq.s32.totalorder %s11, 1
    %p71 = scmp.ne.s32.totalorder %s66, %s68
    %p72 = scmp.eq.s32.totalorder %s11, 0
    %p73 = por %p71, %p72
    %p74 = scmp.ne.s32.totalorder %s66, %s68
    %p75 = scmp.eq.s32.totalorder %s16, 1
    %p76 = por %p74, %p75
    %p77 = scmp.ne.s32.totalorder %s68, %s69
    %p78 = scmp.eq.s32.totalorder %s16, 0
    %p79 = por %p77, %p78
    %p80 = scmp.ne.s32.totalorder %s68, %s69
    %p81 = scmp.eq.s32.totalorder %s17, 1
    %p82 = por %p80, %p81
    %p84 = scmp.ne.s32.totalorder %s69, %s83
    %p85 = scmp.eq.s32.totalorder %s17, 0
    %p86 = por %p84, %p85
    %s88 = sadd.s32 %s87, 1
    %p91 = scmp.eq.s32.totalorder %s11, 1
    %p92 = scmp.ne.s32.totalorder %s87, %s89
    %p93 = scmp.eq.s32.totalorder %s11, 0
    %p94 = por %p92, %p93
    %p95 = scmp.ne.s32.totalorder %s87, %s89
    %p96 = scmp.eq.s32.totalorder %s16, 1
    %p97 = por %p95, %p96
    %p98 = scmp.ne.s32.totalorder %s89, %s90
    %p99 = scmp.eq.s32.totalorder %s16, 0
    %p100 = por %p98, %p99
    %p101 = scmp.ne.s32.totalorder %s89, %s90
    %p102 = scmp.eq.s32.totalorder %s17, 1
    %p103 = por %p101, %p102
    %p105 = scmp.ne.s32.totalorder %s90, %s104
    %p106 = scmp.eq.s32.totalorder %s17, 0
    %p107 = por %p105, %p106
    %s109 = sadd.s32 %s108, 1
    %p112 = scmp.eq.s32.totalorder %s11, 1
    %p113 = scmp.ne.s32.totalorder %s108, %s110
    %p114 = scmp.eq.s32.totalorder %s11, 0
    %p115 = por %p113, %p114
    %p116 = scmp.ne.s32.totalorder %s108, %s110
    %p117 = scmp.eq.s32.totalorder %s16, 1
    %p118 = por %p116, %p117
    %p119 = scmp.ne.s32.totalorder %s110, %s111
    %p120 = scmp.eq.s32.totalorder %s16, 0
    %p121 = por %p119, %p120
    %p122 = scmp.ne.s32.totalorder %s110, %s111
    %p123 = scmp.eq.s32.totalorder %s17, 1
    %p124 = por %p122, %p123
    %p126 = scmp.ne.s32.totalorder %s111, %s125
    %p127 = scmp.eq.s32.totalorder %s17, 0
    %p128 = por %p126, %p127
    %s129 = ssub.s32 %s11, %s18
    %p130 = scmp.eq.s32.totalorder %s129, 0
    %s132 = sadd.s32 %s131, 1
    %s133 = scalar_select %p130, %s131, %s132
    %p136 = pneg %p130
    %p137 = scmp.eq.s32.totalorder %s11, 1
    %p138 = por %p136, %p137
    %p139 = scmp.ne.s32.totalorder %s131, %s134
    %p140 = scmp.eq.s32.totalorder %s11, 0
    %p141 = por %p139, %p140
    %p142 = scmp.ne.s32.totalorder %s131, %s134
    %p143 = scmp.eq.s32.totalorder %s16, 1
    %p144 = por %p142, %p143
    %p145 = scmp.ne.s32.totalorder %s134, %s135
    %p146 = scmp.eq.s32.totalorder %s16, 0
    %p147 = por %p145, %p146
    %p148 = scmp.ne.s32.totalorder %s134, %s135
    %p149 = scmp.eq.s32.totalorder %s17, 1
    %p150 = por %p148, %p149
    %p152 = scmp.ne.s32.totalorder %s135, %s151
    %p153 = scmp.eq.s32.totalorder %s17, 0
    %p154 = por %p152, %p153
    %p155 = scmp.le.s32.totalorder 1, %s11
    %p156 = scmp.lt.s32.totalorder %s11, 3
    %p157 = pnand %p155, %p156
    %p158 = pneg %p157
    // Predicated region
    $region9: #{residual_block_pallas.1} parent=5 // pred_check
      _
    $region10: #{residual_block_pallas.1} parent=5 // pred_check_branch
      %160 = sbr.rel (%p157) target = $region12
    $region11: #{residual_block_pallas.1} parent=5 // pred_region
      %s161 = ssub.s32 %s11, 1
      // Predicated region
      $region13: #{residual_block_pallas.1} parent=11 // pred_check
        %p162 = pneg %p58
      $region14: #{residual_block_pallas.1} parent=11 // pred_check_branch
        %164 = sbr.rel (%p162) target = $region16
      $region15: #{residual_block_pallas.1} parent=11 // pred_region
        _
      $region16: #{residual_block_pallas.1} parent=11 // pred_fallthru
        _
      // Predicated region
      $region17: #{residual_block_pallas.1} parent=11 // pred_check
        %p165 = pneg %p79
      $region18: #{residual_block_pallas.1} parent=11 // pred_check_branch
        %167 = sbr.rel (%p165) target = $region20
      $region19: #{residual_block_pallas.1} parent=11 // pred_region
        _
      $region20: #{residual_block_pallas.1} parent=11 // pred_fallthru
        _
      // Predicated region
      $region21: #{residual_block_pallas.1} parent=11 // pred_check
        %p168 = pneg %p100
      $region22: #{residual_block_pallas.1} parent=11 // pred_check_branch
        %170 = sbr.rel (%p168) target = $region24
      $region23: #{residual_block_pallas.1} parent=11 // pred_region
        _
      $region24: #{residual_block_pallas.1} parent=11 // pred_fallthru
        _
      // Predicated region
      $region25: #{residual_block_pallas.1} parent=11 // pred_check
        %p171 = pneg %p121
      $region26: #{residual_block_pallas.1} parent=11 // pred_check_branch
        %173 = sbr.rel (%p171) target = $region28
      $region27: #{residual_block_pallas.1} parent=11 // pred_region
        _
      $region28: #{residual_block_pallas.1} parent=11 // pred_fallthru
        _
    $region12: #{residual_block_pallas.1} parent=5 // pred_fallthru
      _
    %p174 = scmp.lt.s32.totalorder %s11, 2
    // Predicated region
    $region29: #{residual_block_pallas.1} parent=5 // pred_check
      %p175 = pneg %p174
    $region30: #{residual_block_pallas.1} parent=5 // pred_check_branch
      %177 = sbr.rel (%p175) target = $region32
    $region31: #{residual_block_pallas.1} parent=5 // pred_region
      // Predicated region
      $region33: #{residual_block_pallas.1} parent=31 // pred_check
        %p178 = pneg %p31
      $region34: #{residual_block_pallas.1} parent=31 // pred_check_branch
        %180 = sbr.rel (%p178) target = $region36
      $region35: #{residual_block_pallas.1} parent=31 // pred_region
        %p181 = scmp.lt.s32.totalorder %s11, 1
        %s182 = scalar_select %p181, %s11, 1
        %s183 = smul.addr %s182, 2
        %s184 = smul.addr %s183, 4
        %s185 = scalar_lea.vmem %s0, %s184
      $region36: #{residual_block_pallas.1} parent=31 // pred_fallthru
        _
    $region32: #{residual_block_pallas.1} parent=5 // pred_fallthru
      _
    %p186 = scmp.le.s32.totalorder 1, %s11
    %p187 = scmp.lt.s32.totalorder %s11, 3
    %p188 = pnand %p186, %p187
    %p189 = pneg %p188
    // Predicated region
    $region37: #{residual_block_pallas.1} parent=5 // pred_check
      _
    $region38: #{residual_block_pallas.1} parent=5 // pred_check_branch
      %191 = sbr.rel (%p188) target = $region40
    $region39: #{residual_block_pallas.1} parent=5 // pred_region
      %s192 = ssub.s32 %s11, 1
      %p193 = scmp.lt.s32.totalorder %s16, 1
      %s194 = scalar_select %p193, %s16, 1
      %s195 = smul.addr %s194, 2
      %s196 = smul.addr %s195, 4
      %s197 = scalar_lea.vmem %s0, %s196
      %p198 = pneg %p37
      %p199 = pneg %p34
      %p200 = pneg %p58
      %p201 = pneg %p55
      %p202 = pneg %p79
      %p203 = pneg %p76
      %p204 = pneg %p100
      %p205 = pneg %p97
      %p206 = pneg %p121
      %p207 = pneg %p118
      %p208 = pneg %p147
      %p209 = pneg %p144
      %p210 = scmp.lt.s32.totalorder %s16, 1
      %s211 = scalar_select %p210, %s16, 1
      %s212 = smul.addr %s211, 2
      %s213 = smul.addr %s212, 4
      %s214 = scalar_lea.vmem %s5, %s213
      %p215 = scmp.lt.s32.totalorder %s16, 1
      %s216 = scalar_select %p215, %s16, 1
      %s217 = smul.addr %s216, 2
      %s218 = smul.addr %s217, 4
      %s219 = scalar_lea.vmem %s0, %s218
      %p220 = scmp.lt.s32.totalorder %s16, 1
      %s221 = scalar_select %p220, %s16, 1
      %s222 = smul.addr %s221, 2
      %s223 = smul.addr %s222, 4
      %s224 = scalar_lea.vmem %s5, %s223
      %v225 = vlaneseq
      %v226 = vand.u32 %v225, 127
      %v227 = vadd.s32 %v226, 128
      %vm228 = vcmp.lt.s32.totalorder %v226, 0
      %v229 = vsub.s32 0, %v226
      %v230 = vsel %vm228, %v229, %v226
      %v231 = vshrl.u32 %v230, 4
      %v232 = vand.u32 %v230, 15
      %v233 = vsub.s32 0, %v232
      %v234 = vsel %vm228, %v233, %v232
      %vm235 = vcmp.lt.s32.totalorder %v227, 0
      %v236 = vsub.s32 0, %v227
      %v237 = vsel %vm235, %v236, %v227
      %v238 = vshrl.u32 %v237, 4
      %v239 = vand.u32 %v237, 15
      %v240 = vsub.s32 0, %v239
      %v241 = vsel %vm235, %v240, %v239
      %vm242 = vcmp.ne.s32.totalorder %v234, 0
      %vm243 = vcmp.ne.s32.totalorder %v241, 0
      %vm244 = vcmp.lt.s32.totalorder %v234, 0
      %vm245 = vcmp.lt.s32.totalorder %v241, 0
      %vm246 = vmand %vm244, %vm242
      %vm247 = vmand %vm245, %vm243
      %v248 = vadd.s32 %v234, 16
      %v249 = vadd.s32 %v241, 16
      %v250 = vsel %vm246, %v248, %v234
      %v251 = vsel %vm247, %v249, %v241
      %vm252 = vcmp.ge.s32.totalorder %v250, 1
      %vm253 = vcmp.ge.s32.totalorder %v251, 1
      %vm254 = vcmp.lt.s32.totalorder %v250, 15
      %vm255 = vcmp.lt.s32.totalorder %v251, 15
      %v256 = vld [vmem:[%s219] sm:$0xff]
      %258 = vst [vmem:[#allocation1] ss:$2 sm:$0xff] %v256
      %v259 = vld.sshfl [vmem:[#allocation1] sm:$0xff pattern:$0x75316420]
      %v260 = vld.sshfl [vmem:[#allocation1 + $0x8] sm:$0xff pattern:$0x75316420]
      %261 = vrot.lane.b32.xlu0 %v259, 17
      %v262 = vpop.permute.xlu0 %261
      %263 = vrot.lane.b32.xlu0 %v260, 17
      %v264 = vpop.permute.xlu0 %263
      %vm265 = vcmask 138240
      %v266 = vsel %vm265, %v262, %v264
      %v269 = vsel %vm265, 0.0, %v262
      %v270 = vsel %vm252, %v269, 0.0
      %v271 = vsel %vm253, %v266, 0.0
      %v272 = vld [vmem:[%s1] sm:$0xf]
      %273 = vst [vmem:[#allocation1] ss:$2 sm:$0xff] %v256
      %v274 = vld.sshfl [vmem:[#allocation1] sm:$0xff pattern:$0x75316420]
      %v275 = vld.sshfl [vmem:[#allocation1 + $0x8] sm:$0xff pattern:$0x75316420]
      %276 = vrot.lane.b32.xlu0 %v274, 16
      %v277 = vpop.permute.xlu0 %276
      %278 = vrot.lane.b32.xlu0 %v275, 16
      %v279 = vpop.permute.xlu0 %278
      %vm280 = vcmask 130048
      %v281 = vsel %vm280, %v277, %v279
      %v283 = vsel %vm280, 0.0, %v277
      %s284 = scalar_lea.vmem %s1, 4
      %v285 = vld [vmem:[%s284] sm:$0xf]
      %vm286 = vcmask 31744
      %v288 = vsel %vm286, %v285, 0
      %vm290 = vcmask 1043456
      %v292 = vsel %vm290, %v283, 0
      %v294 = vsel %vm290, %v281, 0
      %296 = vmatpush.msra.mxu0 0.0
      %297 = vmatpush.msra.mxu0 0.0
      %298 = vmatpush.msra.mxu0 0.0
      %299 = vmatpush.msra.mxu0 0.0
      %300 = vmatpush.msra.mxu0 0.0
      %301 = vmatpush.msra.mxu0 0.0
      %302 = vmatpush.msra.mxu0 0.0
      %303 = vmatpush.msra.mxu0 0.0
      %304 = vmatpush.msra.mxu0 0.0
      %305 = vmatpush.msra.mxu0 0.0
      %306 = vmatpush.msra.mxu0 0.0
      %307 = vmatpush.msra.mxu0 0.0
      %308 = vmatpush.msra.mxu0 0.0
      %309 = vmatpush.msra.mxu0 0.0
      %310 = vmatpush.msra.mxu0 0.0
      %311 = vmatpush.msra.mxu0 %v292
      %312 = vmatmul.f32.gmra.mxu0 %v288
      %v313 = vpop.f32.mrf.mxu0
      %v314 = vadd.f32 0.0, %v313
      %315 = vdwg.mxu0
      %316 = vmatpush.msra.mxu0 0.0
      %317 = vmatpush.msra.mxu0 0.0
      %318 = vmatpush.msra.mxu0 0.0
      %319 = vmatpush.msra.mxu0 0.0
      %320 = vmatpush.msra.mxu0 0.0
      %321 = vmatpush.msra.mxu0 0.0
      %322 = vmatpush.msra.mxu0 0.0
      %323 = vmatpush.msra.mxu0 0.0
      %324 = vmatpush.msra.mxu0 0.0
      %325 = vmatpush.msra.mxu0 0.0
      %326 = vmatpush.msra.mxu0 0.0
      %327 = vmatpush.msra.mxu0 0.0
      %328 = vmatpush.msra.mxu0 0.0
      %329 = vmatpush.msra.mxu0 0.0
      %330 = vmatpush.msra.mxu0 0.0
      %331 = vmatpush.msra.mxu0 %v294
      %332 = vmatmul.f32.gmra.mxu0 %v288
      %v333 = vpop.f32.mrf.mxu0
      %v334 = vadd.f32 0.0, %v333
      %335 = vdwg.mxu0
      %v337 = vsel %vm286, %v272, 0
      %v340 = vsel %vm290, %v270, 0
      %v343 = vsel %vm290, %v271, 0
      %345 = vmatpush.msra.mxu0 0.0
      %346 = vmatpush.msra.mxu0 0.0
      %347 = vmatpush.msra.mxu0 0.0
      %348 = vmatpush.msra.mxu0 0.0
      %349 = vmatpush.msra.mxu0 0.0
      %350 = vmatpush.msra.mxu0 0.0
      %351 = vmatpush.msra.mxu0 0.0
      %352 = vmatpush.msra.mxu0 0.0
      %353 = vmatpush.msra.mxu0 0.0
      %354 = vmatpush.msra.mxu0 0.0
      %355 = vmatpush.msra.mxu0 0.0
      %356 = vmatpush.msra.mxu0 0.0
      %357 = vmatpush.msra.mxu0 0.0
      %358 = vmatpush.msra.mxu0 0.0
      %359 = vmatpush.msra.mxu0 0.0
      %360 = vmatpush.msra.mxu0 %v340
      %361 = vmatmul.f32.gmra.mxu0 %v337
      %v362 = vpop.f32.mrf.mxu0
      %v363 = vadd.f32 %v314, %v362
      %364 = vdwg.mxu0
      %365 = vmatpush.msra.mxu0 0.0
      %366 = vmatpush.msra.mxu0 0.0
      %367 = vmatpush.msra.mxu0 0.0
      %368 = vmatpush.msra.mxu0 0.0
      %369 = vmatpush.msra.mxu0 0.0
      %370 = vmatpush.msra.mxu0 0.0
      %371 = vmatpush.msra.mxu0 0.0
      %372 = vmatpush.msra.mxu0 0.0
      %373 = vmatpush.msra.mxu0 0.0
      %374 = vmatpush.msra.mxu0 0.0
      %375 = vmatpush.msra.mxu0 0.0
      %376 = vmatpush.msra.mxu0 0.0
      %377 = vmatpush.msra.mxu0 0.0
      %378 = vmatpush.msra.mxu0 0.0
      %379 = vmatpush.msra.mxu0 0.0
      %380 = vmatpush.msra.mxu0 %v343
      %381 = vmatmul.f32.gmra.mxu0 %v337
      %v382 = vpop.f32.mrf.mxu0
      %v383 = vadd.f32 %v334, %v382
      %384 = vdwg.mxu0
      %385 = vst [vmem:[#allocation1] ss:$2 sm:$0xff] %v256
      %v386 = vld.sshfl [vmem:[#allocation1] sm:$0xff pattern:$0x75316420]
      %v387 = vld.sshfl [vmem:[#allocation1 + $0x8] sm:$0xff pattern:$0x75316420]
      %388 = vrot.lane.b32.xlu0 %v386, 15
      %v389 = vpop.permute.xlu0 %388
      %390 = vrot.lane.b32.xlu0 %v387, 15
      %v391 = vpop.permute.xlu0 %390
      %vm392 = vcmask 121856
      %v393 = vsel %vm392, %v389, %v391
      %v396 = vsel %vm392, 0.0, %v389
      %v397 = vsel %vm254, %v396, 0.0
      %v398 = vsel %vm255, %v393, 0.0
      %s399 = scalar_lea.vmem %s1, 8
      %v400 = vld [vmem:[%s399] sm:$0xf]
      %v402 = vsel %vm286, %v400, 0
      %v405 = vsel %vm290, %v397, 0
      %v408 = vsel %vm290, %v398, 0
      %410 = vmatpush.msra.mxu0 0.0
      %411 = vmatpush.msra.mxu0 0.0
      %412 = vmatpush.msra.mxu0 0.0
      %413 = vmatpush.msra.mxu0 0.0
      %414 = vmatpush.msra.mxu0 0.0
      %415 = vmatpush.msra.mxu0 0.0
      %416 = vmatpush.msra.mxu0 0.0
      %417 = vmatpush.msra.mxu0 0.0
      %418 = vmatpush.msra.mxu0 0.0
      %419 = vmatpush.msra.mxu0 0.0
      %420 = vmatpush.msra.mxu0 0.0
      %421 = vmatpush.msra.mxu0 0.0
      %422 = vmatpush.msra.mxu0 0.0
      %423 = vmatpush.msra.mxu0 0.0
      %424 = vmatpush.msra.mxu0 0.0
      %425 = vmatpush.msra.mxu0 %v405
      %426 = vmatmul.f32.gmra.mxu0 %v402
      %v427 = vpop.f32.mrf.mxu0
      %v428 = vadd.f32 0.0, %v427
      %429 = vdwg.mxu0
      %430 = vmatpush.msra.mxu0 0.0
      %431 = vmatpush.msra.mxu0 0.0
      %432 = vmatpush.msra.mxu0 0.0
      %433 = vmatpush.msra.mxu0 0.0
      %434 = vmatpush.msra.mxu0 0.0
      %435 = vmatpush.msra.mxu0 0.0
      %436 = vmatpush.msra.mxu0 0.0
      %437 = vmatpush.msra.mxu0 0.0
      %438 = vmatpush.msra.mxu0 0.0
      %439 = vmatpush.msra.mxu0 0.0
      %440 = vmatpush.msra.mxu0 0.0
      %441 = vmatpush.msra.mxu0 0.0
      %442 = vmatpush.msra.mxu0 0.0
      %443 = vmatpush.msra.mxu0 0.0
      %444 = vmatpush.msra.mxu0 0.0
      %445 = vmatpush.msra.mxu0 %v408
      %446 = vmatmul.f32.gmra.mxu0 %v402
      %v447 = vpop.f32.mrf.mxu0
      %v448 = vadd.f32 0.0, %v447
      %449 = vdwg.mxu0
      %v450 = vadd.f32 %v363, %v428
      %v451 = vadd.f32 %v383, %v448
      %452 = vst [vmem:[#allocation1] ss:$2 sm:$0xff] %v256
      %v453 = vld.sshfl [vmem:[#allocation1] sm:$0xff pattern:$0x75316420]
      %v454 = vld.sshfl [vmem:[#allocation1 + $0x8] sm:$0xff pattern:$0x75316420]
      %455 = vrot.lane.b32.xlu0 %v453, 1
      %v456 = vpop.permute.xlu0 %455
      %457 = vrot.lane.b32.xlu0 %v454, 1
      %v458 = vpop.permute.xlu0 %457
      %vm459 = vcmask 7168
      %v460 = vsel %vm459, %v456, %v458
      %v463 = vsel %vm459, 0.0, %v456
      %v464 = vsel %vm252, %v463, 0.0
      %v465 = vsel %vm253, %v460, 0.0
      %s466 = scalar_lea.vmem %s1, 12
      %v467 = vld [vmem:[%s466] sm:$0xf]
      %v469 = vsel %vm286, %v467, 0
      %v472 = vsel %vm290, %v464, 0
      %v475 = vsel %vm290, %v465, 0
      %477 = vmatpush.msra.mxu0 0.0
      %478 = vmatpush.msra.mxu0 0.0
      %479 = vmatpush.msra.mxu0 0.0
      %480 = vmatpush.msra.mxu0 0.0
      %481 = vmatpush.msra.mxu0 0.0
      %482 = vmatpush.msra.mxu0 0.0
      %483 = vmatpush.msra.mxu0 0.0
      %484 = vmatpush.msra.mxu0 0.0
      %485 = vmatpush.msra.mxu0 0.0
      %486 = vmatpush.msra.mxu0 0.0
      %487 = vmatpush.msra.mxu0 0.0
      %488 = vmatpush.msra.mxu0 0.0
      %489 = vmatpush.msra.mxu0 0.0
      %490 = vmatpush.msra.mxu0 0.0
      %491 = vmatpush.msra.mxu0 0.0
      %492 = vmatpush.msra.mxu0 %v472
      %493 = vmatmul.f32.gmra.mxu0 %v469
      %v494 = vpop.f32.mrf.mxu0
      %v495 = vadd.f32 0.0, %v494
      %496 = vdwg.mxu0
      %497 = vmatpush.msra.mxu0 0.0
      %498 = vmatpush.msra.mxu0 0.0
      %499 = vmatpush.msra.mxu0 0.0
      %500 = vmatpush.msra.mxu0 0.0
      %501 = vmatpush.msra.mxu0 0.0
      %502 = vmatpush.msra.mxu0 0.0
      %503 = vmatpush.msra.mxu0 0.0
      %504 = vmatpush.msra.mxu0 0.0
      %505 = vmatpush.msra.mxu0 0.0
      %506 = vmatpush.msra.mxu0 0.0
      %507 = vmatpush.msra.mxu0 0.0
      %508 = vmatpush.msra.mxu0 0.0
      %509 = vmatpush.msra.mxu0 0.0
      %510 = vmatpush.msra.mxu0 0.0
      %511 = vmatpush.msra.mxu0 0.0
      %512 = vmatpush.msra.mxu0 %v475
      %513 = vmatmul.f32.gmra.mxu0 %v469
      %v514 = vpop.f32.mrf.mxu0
      %v515 = vadd.f32 0.0, %v514
      %516 = vdwg.mxu0
      %v517 = vadd.f32 %v450, %v495
      %v518 = vadd.f32 %v451, %v515
      %s519 = scalar_lea.vmem %s1, 16
      %v520 = vld [vmem:[%s519] sm:$0xf]
      %521 = vst [vmem:[#allocation1] ss:$2 sm:$0xff] %v256
      %v522 = vld.sshfl [vmem:[#allocation1] sm:$0xff pattern:$0x75316420]
      %v523 = vld.sshfl [vmem:[#allocation1 + $0x8] sm:$0xff pattern:$0x75316420]
      %v525 = vsel %vm286, %v520, 0
      %v527 = vsel %vm290, %v522, 0
      %v529 = vsel %vm290, %v523, 0
      %531 = vmatpush.msra.mxu0 0.0
      %532 = vmatpush.msra.mxu0 0.0
      %533 = vmatpush.msra.mxu0 0.0
      %534 = vmatpush.msra.mxu0 0.0
      %535 = vmatpush.msra.mxu0 0.0
      %536 = vmatpush.msra.mxu0 0.0
      %537 = vmatpush.msra.mxu0 0.0
      %538 = vmatpush.msra.mxu0 0.0
      %539 = vmatpush.msra.mxu0 0.0
      %540 = vmatpush.msra.mxu0 0.0
      %541 = vmatpush.msra.mxu0 0.0
      %542 = vmatpush.msra.mxu0 0.0
      %543 = vmatpush.msra.mxu0 0.0
      %544 = vmatpush.msra.mxu0 0.0
      %545 = vmatpush.msra.mxu0 0.0
      %546 = vmatpush.msra.mxu0 %v527
      %547 = vmatmul.f32.gmra.mxu0 %v525
      %v548 = vpop.f32.mrf.mxu0
      %v549 = vadd.f32 0.0, %v548
      %550 = vdwg.mxu0
      %551 = vmatpush.msra.mxu0 0.0
      %552 = vmatpush.msra.mxu0 0.0
      %553 = vmatpush.msra.mxu0 0.0
      %554 = vmatpush.msra.mxu0 0.0
      %555 = vmatpush.msra.mxu0 0.0
      %556 = vmatpush.msra.mxu0 0.0
      %557 = vmatpush.msra.mxu0 0.0
      %558 = vmatpush.msra.mxu0 0.0
      %559 = vmatpush.msra.mxu0 0.0
      %560 = vmatpush.msra.mxu0 0.0
      %561 = vmatpush.msra.mxu0 0.0
      %562 = vmatpush.msra.mxu0 0.0
      %563 = vmatpush.msra.mxu0 0.0
      %564 = vmatpush.msra.mxu0 0.0
      %565 = vmatpush.msra.mxu0 0.0
      %566 = vmatpush.msra.mxu0 %v529
      %567 = vmatmul.f32.gmra.mxu0 %v525
      %v568 = vpop.f32.mrf.mxu0
      %v569 = vadd.f32 0.0, %v568
      %570 = vdwg.mxu0
      %v571 = vadd.f32 %v517, %v549
      %v572 = vadd.f32 %v518, %v569
      %573 = vst [vmem:[#allocation1] ss:$2 sm:$0xff] %v256
      %v574 = vld.sshfl [vmem:[#allocation1] sm:$0xff pattern:$0x75316420]
      %v575 = vld.sshfl [vmem:[#allocation1 + $0x8] sm:$0xff pattern:$0x75316420]
      %576 = vrot.lane.b32.xlu0 %v574, 127
      %v577 = vpop.permute.xlu0 %576
      %578 = vrot.lane.b32.xlu0 %v575, 127
      %v579 = vpop.permute.xlu0 %578
      %vm580 = vcmask 1039360
      %v581 = vsel %vm580, %v577, %v579
      %v584 = vsel %vm580, %v579, 0.0
      %v585 = vsel %vm254, %v581, 0.0
      %v586 = vsel %vm255, %v584, 0.0
      %s587 = scalar_lea.vmem %s1, 20
      %v588 = vld [vmem:[%s587] sm:$0xf]
      %v590 = vsel %vm286, %v588, 0
      %v593 = vsel %vm290, %v585, 0
      %v596 = vsel %vm290, %v586, 0
      %598 = vmatpush.msra.mxu0 0.0
      %599 = vmatpush.msra.mxu0 0.0
      %600 = vmatpush.msra.mxu0 0.0
      %601 = vmatpush.msra.mxu0 0.0
      %602 = vmatpush.msra.mxu0 0.0
      %603 = vmatpush.msra.mxu0 0.0
      %604 = vmatpush.msra.mxu0 0.0
      %605 = vmatpush.msra.mxu0 0.0
      %606 = vmatpush.msra.mxu0 0.0
      %607 = vmatpush.msra.mxu0 0.0
      %608 = vmatpush.msra.mxu0 0.0
      %609 = vmatpush.msra.mxu0 0.0
      %610 = vmatpush.msra.mxu0 0.0
      %611 = vmatpush.msra.mxu0 0.0
      %612 = vmatpush.msra.mxu0 0.0
      %613 = vmatpush.msra.mxu0 %v593
      %614 = vmatmul.f32.gmra.mxu0 %v590
      %v615 = vpop.f32.mrf.mxu0
      %v616 = vadd.f32 0.0, %v615
      %617 = vdwg.mxu0
      %618 = vmatpush.msra.mxu0 0.0
      %619 = vmatpush.msra.mxu0 0.0
      %620 = vmatpush.msra.mxu0 0.0
      %621 = vmatpush.msra.mxu0 0.0
      %622 = vmatpush.msra.mxu0 0.0
      %623 = vmatpush.msra.mxu0 0.0
      %624 = vmatpush.msra.mxu0 0.0
      %625 = vmatpush.msra.mxu0 0.0
      %626 = vmatpush.msra.mxu0 0.0
      %627 = vmatpush.msra.mxu0 0.0
      %628 = vmatpush.msra.mxu0 0.0
      %629 = vmatpush.msra.mxu0 0.0
      %630 = vmatpush.msra.mxu0 0.0
      %631 = vmatpush.msra.mxu0 0.0
      %632 = vmatpush.msra.mxu0 0.0
      %633 = vmatpush.msra.mxu0 %v596
      %634 = vmatmul.f32.gmra.mxu0 %v590
      %v635 = vpop.f32.mrf.mxu0
      %v636 = vadd.f32 0.0, %v635
      %637 = vdwg.mxu0
      %v638 = vadd.f32 %v571, %v616
      %v639 = vadd.f32 %v572, %v636
      %640 = vst [vmem:[#allocation1] ss:$2 sm:$0xff] %v256
      %v641 = vld.sshfl [vmem:[#allocation1] sm:$0xff pattern:$0x75316420]
      %v642 = vld.sshfl [vmem:[#allocation1 + $0x8] sm:$0xff pattern:$0x75316420]
      %643 = vrot.lane.b32.xlu0 %v641, 113
      %v644 = vpop.permute.xlu0 %643
      %645 = vrot.lane.b32.xlu0 %v642, 113
      %v646 = vpop.permute.xlu0 %645
      %vm647 = vcmask 924672
      %v648 = vsel %vm647, %v644, %v646
      %v651 = vsel %vm647, %v646, 0.0
      %v652 = vsel %vm252, %v648, 0.0
      %v653 = vsel %vm253, %v651, 0.0
      %s654 = scalar_lea.vmem %s1, 24
      %v655 = vld [vmem:[%s654] sm:$0xf]
      %v657 = vsel %vm286, %v655, 0
      %v660 = vsel %vm290, %v652, 0
      %v663 = vsel %vm290, %v653, 0
      %665 = vmatpush.msra.mxu0 0.0
      %666 = vmatpush.msra.mxu0 0.0
      %667 = vmatpush.msra.mxu0 0.0
      %668 = vmatpush.msra.mxu0 0.0
      %669 = vmatpush.msra.mxu0 0.0
      %670 = vmatpush.msra.mxu0 0.0
      %671 = vmatpush.msra.mxu0 0.0
      %672 = vmatpush.msra.mxu0 0.0
      %673 = vmatpush.msra.mxu0 0.0
      %674 = vmatpush.msra.mxu0 0.0
      %675 = vmatpush.msra.mxu0 0.0
      %676 = vmatpush.msra.mxu0 0.0
      %677 = vmatpush.msra.mxu0 0.0
      %678 = vmatpush.msra.mxu0 0.0
      %679 = vmatpush.msra.mxu0 0.0
      %680 = vmatpush.msra.mxu0 %v660
      %681 = vmatmul.f32.gmra.mxu0 %v657
      %v682 = vpop.f32.mrf.mxu0
      %v683 = vadd.f32 0.0, %v682
      %684 = vdwg.mxu0
      %685 = vmatpush.msra.mxu0 0.0
      %686 = vmatpush.msra.mxu0 0.0
      %687 = vmatpush.msra.mxu0 0.0
      %688 = vmatpush.msra.mxu0 0.0
      %689 = vmatpush.msra.mxu0 0.0
      %690 = vmatpush.msra.mxu0 0.0
      %691 = vmatpush.msra.mxu0 0.0
      %692 = vmatpush.msra.mxu0 0.0
      %693 = vmatpush.msra.mxu0 0.0
      %694 = vmatpush.msra.mxu0 0.0
      %695 = vmatpush.msra.mxu0 0.0
      %696 = vmatpush.msra.mxu0 0.0
      %697 = vmatpush.msra.mxu0 0.0
      %698 = vmatpush.msra.mxu0 0.0
      %699 = vmatpush.msra.mxu0 0.0
      %700 = vmatpush.msra.mxu0 %v663
      %701 = vmatmul.f32.gmra.mxu0 %v657
      %v702 = vpop.f32.mrf.mxu0
      %v703 = vadd.f32 0.0, %v702
      %704 = vdwg.mxu0
      %v705 = vadd.f32 %v638, %v683
      %v706 = vadd.f32 %v639, %v703
      %707 = vst [vmem:[#allocation1] ss:$2 sm:$0xff] %v256
      %v708 = vld.sshfl [vmem:[#allocation1] sm:$0xff pattern:$0x75316420]
      %v709 = vld.sshfl [vmem:[#allocation1 + $0x8] sm:$0xff pattern:$0x75316420]
      %710 = vrot.lane.b32.xlu0 %v708, 112
      %v711 = vpop.permute.xlu0 %710
      %712 = vrot.lane.b32.xlu0 %v709, 112
      %v713 = vpop.permute.xlu0 %712
      %vm714 = vcmask 916480
      %v715 = vsel %vm714, %v711, %v713
      %v717 = vsel %vm714, %v713, 0.0
      %s718 = scalar_lea.vmem %s1, 28
      %v719 = vld [vmem:[%s718] sm:$0xf]
      %v721 = vsel %vm286, %v719, 0
      %v723 = vsel %vm290, %v715, 0
      %v726 = vsel %vm290, %v717, 0
      %728 = vmatpush.msra.mxu0 0.0
      %729 = vmatpush.msra.mxu0 0.0
      %730 = vmatpush.msra.mxu0 0.0
      %731 = vmatpush.msra.mxu0 0.0
      %732 = vmatpush.msra.mxu0 0.0
      %733 = vmatpush.msra.mxu0 0.0
      %734 = vmatpush.msra.mxu0 0.0
      %735 = vmatpush.msra.mxu0 0.0
      %736 = vmatpush.msra.mxu0 0.0
      %737 = vmatpush.msra.mxu0 0.0
      %738 = vmatpush.msra.mxu0 0.0
      %739 = vmatpush.msra.mxu0 0.0
      %740 = vmatpush.msra.mxu0 0.0
      %741 = vmatpush.msra.mxu0 0.0
      %742 = vmatpush.msra.mxu0 0.0
      %743 = vmatpush.msra.mxu0 %v723
      %744 = vmatmul.f32.gmra.mxu0 %v721
      %v745 = vpop.f32.mrf.mxu0
      %v746 = vadd.f32 0.0, %v745
      %747 = vdwg.mxu0
      %748 = vmatpush.msra.mxu0 0.0
      %749 = vmatpush.msra.mxu0 0.0
      %750 = vmatpush.msra.mxu0 0.0
      %751 = vmatpush.msra.mxu0 0.0
      %752 = vmatpush.msra.mxu0 0.0
      %753 = vmatpush.msra.mxu0 0.0
      %754 = vmatpush.msra.mxu0 0.0
      %755 = vmatpush.msra.mxu0 0.0
      %756 = vmatpush.msra.mxu0 0.0
      %757 = vmatpush.msra.mxu0 0.0
      %758 = vmatpush.msra.mxu0 0.0
      %759 = vmatpush.msra.mxu0 0.0
      %760 = vmatpush.msra.mxu0 0.0
      %761 = vmatpush.msra.mxu0 0.0
      %762 = vmatpush.msra.mxu0 0.0
      %763 = vmatpush.msra.mxu0 %v726
      %764 = vmatmul.f32.gmra.mxu0 %v721
      %v765 = vpop.f32.mrf.mxu0
      %v766 = vadd.f32 0.0, %v765
      %767 = vdwg.mxu0
      %v768 = vadd.f32 %v705, %v746
      %v769 = vadd.f32 %v706, %v766
      %770 = vst [vmem:[#allocation1] ss:$2 sm:$0xff] %v256
      %v771 = vld.sshfl [vmem:[#allocation1] sm:$0xff pattern:$0x75316420]
      %v772 = vld.sshfl [vmem:[#allocation1 + $0x8] sm:$0xff pattern:$0x75316420]
      %773 = vrot.lane.b32.xlu0 %v771, 111
      %v774 = vpop.permute.xlu0 %773
      %775 = vrot.lane.b32.xlu0 %v772, 111
      %v776 = vpop.permute.xlu0 %775
      %vm777 = vcmask 908288
      %v778 = vsel %vm777, %v774, %v776
      %v781 = vsel %vm777, %v776, 0.0
      %v782 = vsel %vm254, %v778, 0.0
      %v783 = vsel %vm255, %v781, 0.0
      %s784 = scalar_lea.vmem %s1, 32
      %v785 = vld [vmem:[%s784] sm:$0xf]
      %v787 = vsel %vm286, %v785, 0
      %v790 = vsel %vm290, %v782, 0
      %v793 = vsel %vm290, %v783, 0
      %795 = vmatpush.msra.mxu0 0.0
      %796 = vmatpush.msra.mxu0 0.0
      %797 = vmatpush.msra.mxu0 0.0
      %798 = vmatpush.msra.mxu0 0.0
      %799 = vmatpush.msra.mxu0 0.0
      %800 = vmatpush.msra.mxu0 0.0
      %801 = vmatpush.msra.mxu0 0.0
      %802 = vmatpush.msra.mxu0 0.0
      %803 = vmatpush.msra.mxu0 0.0
      %804 = vmatpush.msra.mxu0 0.0
      %805 = vmatpush.msra.mxu0 0.0
      %806 = vmatpush.msra.mxu0 0.0
      %807 = vmatpush.msra.mxu0 0.0
      %808 = vmatpush.msra.mxu0 0.0
      %809 = vmatpush.msra.mxu0 0.0
      %810 = vmatpush.msra.mxu0 %v790
      %811 = vmatmul.f32.gmra.mxu0 %v787
      %v812 = vpop.f32.mrf.mxu0
      %v813 = vadd.f32 0.0, %v812
      %814 = vdwg.mxu0
      %815 = vmatpush.msra.mxu0 0.0
      %816 = vmatpush.msra.mxu0 0.0
      %817 = vmatpush.msra.mxu0 0.0
      %818 = vmatpush.msra.mxu0 0.0
      %819 = vmatpush.msra.mxu0 0.0
      %820 = vmatpush.msra.mxu0 0.0
      %821 = vmatpush.msra.mxu0 0.0
      %822 = vmatpush.msra.mxu0 0.0
      %823 = vmatpush.msra.mxu0 0.0
      %824 = vmatpush.msra.mxu0 0.0
      %825 = vmatpush.msra.mxu0 0.0
      %826 = vmatpush.msra.mxu0 0.0
      %827 = vmatpush.msra.mxu0 0.0
      %828 = vmatpush.msra.mxu0 0.0
      %829 = vmatpush.msra.mxu0 0.0
      %830 = vmatpush.msra.mxu0 %v793
      %831 = vmatmul.f32.gmra.mxu0 %v787
      %v832 = vpop.f32.mrf.mxu0
      %v833 = vadd.f32 0.0, %v832
      %834 = vdwg.mxu0
      %v835 = vadd.f32 %v768, %v813
      %v836 = vadd.f32 %v769, %v833
      %v837 = vld [vmem:[%s2] sm:$0xf]
      %839 = vset.pattern.permute.xlu0 0
      %840 = vperm.xlu0 %839, %v837
      %v841 = vpop.permute.xlu0 %840
      %v843 = vadd.f32 %v835, %v841
      %v844 = vadd.f32 %v836, %v841
      %v845 = vmax.f32 %v843, 0.0
      %v846 = vmax.f32 %v844, 0.0
      %849 = vrot.lane.b32.xlu0 %v845, 17
      %v850 = vpop.permute.xlu0 %849
      %851 = vrot.lane.b32.xlu0 %v846, 17
      %v852 = vpop.permute.xlu0 %851
      %v853 = vsel %vm265, %v850, %v852
      %v856 = vsel %vm265, 0.0, %v850
      %v857 = vsel %vm252, %v856, 0.0
      %v858 = vsel %vm253, %v853, 0.0
      %v859 = vld [vmem:[%s3] sm:$0xf]
      %860 = vrot.lane.b32.xlu0 %v845, 16
      %v861 = vpop.permute.xlu0 %860
      %862 = vrot.lane.b32.xlu0 %v846, 16
      %v863 = vpop.permute.xlu0 %862
      %v864 = vsel %vm280, %v861, %v863
      %v866 = vsel %vm280, 0.0, %v861
      %s867 = scalar_lea.vmem %s3, 4
      %v868 = vld [vmem:[%s867] sm:$0xf]
      %v870 = vsel %vm286, %v868, 0
      %v873 = vsel %vm290, %v866, 0
      %v875 = vsel %vm290, %v864, 0
      %877 = vmatpush.msra.mxu0 0.0
      %878 = vmatpush.msra.mxu0 0.0
      %879 = vmatpush.msra.mxu0 0.0
      %880 = vmatpush.msra.mxu0 0.0
      %881 = vmatpush.msra.mxu0 0.0
      %882 = vmatpush.msra.mxu0 0.0
      %883 = vmatpush.msra.mxu0 0.0
      %884 = vmatpush.msra.mxu0 0.0
      %885 = vmatpush.msra.mxu0 0.0
      %886 = vmatpush.msra.mxu0 0.0
      %887 = vmatpush.msra.mxu0 0.0
      %888 = vmatpush.msra.mxu0 0.0
      %889 = vmatpush.msra.mxu0 0.0
      %890 = vmatpush.msra.mxu0 0.0
      %891 = vmatpush.msra.mxu0 0.0
      %892 = vmatpush.msra.mxu0 %v873
      %893 = vmatmul.f32.gmra.mxu0 %v870
      %v894 = vpop.f32.mrf.mxu0
      %v895 = vadd.f32 0.0, %v894
      %896 = vdwg.mxu0
      %897 = vmatpush.msra.mxu0 0.0
      %898 = vmatpush.msra.mxu0 0.0
      %899 = vmatpush.msra.mxu0 0.0
      %900 = vmatpush.msra.mxu0 0.0
      %901 = vmatpush.msra.mxu0 0.0
      %902 = vmatpush.msra.mxu0 0.0
      %903 = vmatpush.msra.mxu0 0.0
      %904 = vmatpush.msra.mxu0 0.0
      %905 = vmatpush.msra.mxu0 0.0
      %906 = vmatpush.msra.mxu0 0.0
      %907 = vmatpush.msra.mxu0 0.0
      %908 = vmatpush.msra.mxu0 0.0
      %909 = vmatpush.msra.mxu0 0.0
      %910 = vmatpush.msra.mxu0 0.0
      %911 = vmatpush.msra.mxu0 0.0
      %912 = vmatpush.msra.mxu0 %v875
      %913 = vmatmul.f32.gmra.mxu0 %v870
      %v914 = vpop.f32.mrf.mxu0
      %v915 = vadd.f32 0.0, %v914
      %916 = vdwg.mxu0
      %v918 = vsel %vm286, %v859, 0
      %v921 = vsel %vm290, %v857, 0
      %v924 = vsel %vm290, %v858, 0
      %926 = vmatpush.msra.mxu0 0.0
      %927 = vmatpush.msra.mxu0 0.0
      %928 = vmatpush.msra.mxu0 0.0
      %929 = vmatpush.msra.mxu0 0.0
      %930 = vmatpush.msra.mxu0 0.0
      %931 = vmatpush.msra.mxu0 0.0
      %932 = vmatpush.msra.mxu0 0.0
      %933 = vmatpush.msra.mxu0 0.0
      %934 = vmatpush.msra.mxu0 0.0
      %935 = vmatpush.msra.mxu0 0.0
      %936 = vmatpush.msra.mxu0 0.0
      %937 = vmatpush.msra.mxu0 0.0
      %938 = vmatpush.msra.mxu0 0.0
      %939 = vmatpush.msra.mxu0 0.0
      %940 = vmatpush.msra.mxu0 0.0
      %941 = vmatpush.msra.mxu0 %v921
      %942 = vmatmul.f32.gmra.mxu0 %v918
      %v943 = vpop.f32.mrf.mxu0
      %v944 = vadd.f32 %v895, %v943
      %945 = vdwg.mxu0
      %946 = vmatpush.msra.mxu0 0.0
      %947 = vmatpush.msra.mxu0 0.0
      %948 = vmatpush.msra.mxu0 0.0
      %949 = vmatpush.msra.mxu0 0.0
      %950 = vmatpush.msra.mxu0 0.0
      %951 = vmatpush.msra.mxu0 0.0
      %952 = vmatpush.msra.mxu0 0.0
      %953 = vmatpush.msra.mxu0 0.0
      %954 = vmatpush.msra.mxu0 0.0
      %955 = vmatpush.msra.mxu0 0.0
      %956 = vmatpush.msra.mxu0 0.0
      %957 = vmatpush.msra.mxu0 0.0
      %958 = vmatpush.msra.mxu0 0.0
      %959 = vmatpush.msra.mxu0 0.0
      %960 = vmatpush.msra.mxu0 0.0
      %961 = vmatpush.msra.mxu0 %v924
      %962 = vmatmul.f32.gmra.mxu0 %v918
      %v963 = vpop.f32.mrf.mxu0
      %v964 = vadd.f32 %v915, %v963
      %965 = vdwg.mxu0
      %966 = vrot.lane.b32.xlu0 %v845, 15
      %v967 = vpop.permute.xlu0 %966
      %968 = vrot.lane.b32.xlu0 %v846, 15
      %v969 = vpop.permute.xlu0 %968
      %v970 = vsel %vm392, %v967, %v969
      %v973 = vsel %vm392, 0.0, %v967
      %v974 = vsel %vm254, %v973, 0.0
      %v975 = vsel %vm255, %v970, 0.0
      %s976 = scalar_lea.vmem %s3, 8
      %v977 = vld [vmem:[%s976] sm:$0xf]
      %v979 = vsel %vm286, %v977, 0
      %v982 = vsel %vm290, %v974, 0
      %v985 = vsel %vm290, %v975, 0
      %987 = vmatpush.msra.mxu0 0.0
      %988 = vmatpush.msra.mxu0 0.0
      %989 = vmatpush.msra.mxu0 0.0
      %990 = vmatpush.msra.mxu0 0.0
      %991 = vmatpush.msra.mxu0 0.0
      %992 = vmatpush.msra.mxu0 0.0
      %993 = vmatpush.msra.mxu0 0.0
      %994 = vmatpush.msra.mxu0 0.0
      %995 = vmatpush.msra.mxu0 0.0
      %996 = vmatpush.msra.mxu0 0.0
      %997 = vmatpush.msra.mxu0 0.0
      %998 = vmatpush.msra.mxu0 0.0
      %999 = vmatpush.msra.mxu0 0.0
      %1000 = vmatpush.msra.mxu0 0.0
      %1001 = vmatpush.msra.mxu0 0.0
      %1002 = vmatpush.msra.mxu0 %v982
      %1003 = vmatmul.f32.gmra.mxu0 %v979
      %v1004 = vpop.f32.mrf.mxu0
      %v1005 = vadd.f32 0.0, %v1004
      %1006 = vdwg.mxu0
      %1007 = vmatpush.msra.mxu0 0.0
      %1008 = vmatpush.msra.mxu0 0.0
      %1009 = vmatpush.msra.mxu0 0.0
      %1010 = vmatpush.msra.mxu0 0.0
      %1011 = vmatpush.msra.mxu0 0.0
      %1012 = vmatpush.msra.mxu0 0.0
      %1013 = vmatpush.msra.mxu0 0.0
      %1014 = vmatpush.msra.mxu0 0.0
      %1015 = vmatpush.msra.mxu0 0.0
      %1016 = vmatpush.msra.mxu0 0.0
      %1017 = vmatpush.msra.mxu0 0.0
      %1018 = vmatpush.msra.mxu0 0.0
      %1019 = vmatpush.msra.mxu0 0.0
      %1020 = vmatpush.msra.mxu0 0.0
      %1021 = vmatpush.msra.mxu0 0.0
      %1022 = vmatpush.msra.mxu0 %v985
      %1023 = vmatmul.f32.gmra.mxu0 %v979
      %v1024 = vpop.f32.mrf.mxu0
      %v1025 = vadd.f32 0.0, %v1024
      %1026 = vdwg.mxu0
      %v1027 = vadd.f32 %v944, %v1005
      %v1028 = vadd.f32 %v964, %v1025
      %1029 = vrot.lane.b32.xlu0 %v845, 1
      %v1030 = vpop.permute.xlu0 %1029
      %1031 = vrot.lane.b32.xlu0 %v846, 1
      %v1032 = vpop.permute.xlu0 %1031
      %v1033 = vsel %vm459, %v1030, %v1032
      %v1036 = vsel %vm459, 0.0, %v1030
      %v1037 = vsel %vm252, %v1036, 0.0
      %v1038 = vsel %vm253, %v1033, 0.0
      %s1039 = scalar_lea.vmem %s3, 12
      %v1040 = vld [vmem:[%s1039] sm:$0xf]
      %v1042 = vsel %vm286, %v1040, 0
      %v1045 = vsel %vm290, %v1037, 0
      %v1048 = vsel %vm290, %v1038, 0
      %1050 = vmatpush.msra.mxu0 0.0
      %1051 = vmatpush.msra.mxu0 0.0
      %1052 = vmatpush.msra.mxu0 0.0
      %1053 = vmatpush.msra.mxu0 0.0
      %1054 = vmatpush.msra.mxu0 0.0
      %1055 = vmatpush.msra.mxu0 0.0
      %1056 = vmatpush.msra.mxu0 0.0
      %1057 = vmatpush.msra.mxu0 0.0
      %1058 = vmatpush.msra.mxu0 0.0
      %1059 = vmatpush.msra.mxu0 0.0
      %1060 = vmatpush.msra.mxu0 0.0
      %1061 = vmatpush.msra.mxu0 0.0
      %1062 = vmatpush.msra.mxu0 0.0
      %1063 = vmatpush.msra.mxu0 0.0
      %1064 = vmatpush.msra.mxu0 0.0
      %1065 = vmatpush.msra.mxu0 %v1045
      %1066 = vmatmul.f32.gmra.mxu0 %v1042
      %v1067 = vpop.f32.mrf.mxu0
      %v1068 = vadd.f32 0.0, %v1067
      %1069 = vdwg.mxu0
      %1070 = vmatpush.msra.mxu0 0.0
      %1071 = vmatpush.msra.mxu0 0.0
      %1072 = vmatpush.msra.mxu0 0.0
      %1073 = vmatpush.msra.mxu0 0.0
      %1074 = vmatpush.msra.mxu0 0.0
      %1075 = vmatpush.msra.mxu0 0.0
      %1076 = vmatpush.msra.mxu0 0.0
      %1077 = vmatpush.msra.mxu0 0.0
      %1078 = vmatpush.msra.mxu0 0.0
      %1079 = vmatpush.msra.mxu0 0.0
      %1080 = vmatpush.msra.mxu0 0.0
      %1081 = vmatpush.msra.mxu0 0.0
      %1082 = vmatpush.msra.mxu0 0.0
      %1083 = vmatpush.msra.mxu0 0.0
      %1084 = vmatpush.msra.mxu0 0.0
      %1085 = vmatpush.msra.mxu0 %v1048
      %1086 = vmatmul.f32.gmra.mxu0 %v1042
      %v1087 = vpop.f32.mrf.mxu0
      %v1088 = vadd.f32 0.0, %v1087
      %1089 = vdwg.mxu0
      %v1090 = vadd.f32 %v1027, %v1068
      %v1091 = vadd.f32 %v1028, %v1088
      %s1092 = scalar_lea.vmem %s3, 16
      %v1093 = vld [vmem:[%s1092] sm:$0xf]
      %v1095 = vsel %vm286, %v1093, 0
      %v1097 = vsel %vm290, %v845, 0
      %v1099 = vsel %vm290, %v846, 0
      %1101 = vmatpush.msra.mxu0 0.0
      %1102 = vmatpush.msra.mxu0 0.0
      %1103 = vmatpush.msra.mxu0 0.0
      %1104 = vmatpush.msra.mxu0 0.0
      %1105 = vmatpush.msra.mxu0 0.0
      %1106 = vmatpush.msra.mxu0 0.0
      %1107 = vmatpush.msra.mxu0 0.0
      %1108 = vmatpush.msra.mxu0 0.0
      %1109 = vmatpush.msra.mxu0 0.0
      %1110 = vmatpush.msra.mxu0 0.0
      %1111 = vmatpush.msra.mxu0 0.0
      %1112 = vmatpush.msra.mxu0 0.0
      %1113 = vmatpush.msra.mxu0 0.0
      %1114 = vmatpush.msra.mxu0 0.0
      %1115 = vmatpush.msra.mxu0 0.0
      %1116 = vmatpush.msra.mxu0 %v1097
      %1117 = vmatmul.f32.gmra.mxu0 %v1095
      %v1118 = vpop.f32.mrf.mxu0
      %v1119 = vadd.f32 0.0, %v1118
      %1120 = vdwg.mxu0
      %1121 = vmatpush.msra.mxu0 0.0
      %1122 = vmatpush.msra.mxu0 0.0
      %1123 = vmatpush.msra.mxu0 0.0
      %1124 = vmatpush.msra.mxu0 0.0
      %1125 = vmatpush.msra.mxu0 0.0
      %1126 = vmatpush.msra.mxu0 0.0
      %1127 = vmatpush.msra.mxu0 0.0
      %1128 = vmatpush.msra.mxu0 0.0
      %1129 = vmatpush.msra.mxu0 0.0
      %1130 = vmatpush.msra.mxu0 0.0
      %1131 = vmatpush.msra.mxu0 0.0
      %1132 = vmatpush.msra.mxu0 0.0
      %1133 = vmatpush.msra.mxu0 0.0
      %1134 = vmatpush.msra.mxu0 0.0
      %1135 = vmatpush.msra.mxu0 0.0
      %1136 = vmatpush.msra.mxu0 %v1099
      %1137 = vmatmul.f32.gmra.mxu0 %v1095
      %v1138 = vpop.f32.mrf.mxu0
      %v1139 = vadd.f32 0.0, %v1138
      %1140 = vdwg.mxu0
      %v1141 = vadd.f32 %v1090, %v1119
      %v1142 = vadd.f32 %v1091, %v1139
      %1143 = vrot.lane.b32.xlu0 %v845, 127
      %v1144 = vpop.permute.xlu0 %1143
      %1145 = vrot.lane.b32.xlu0 %v846, 127
      %v1146 = vpop.permute.xlu0 %1145
      %v1147 = vsel %vm580, %v1144, %v1146
      %v1150 = vsel %vm580, %v1146, 0.0
      %v1151 = vsel %vm254, %v1147, 0.0
      %v1152 = vsel %vm255, %v1150, 0.0
      %s1153 = scalar_lea.vmem %s3, 20
      %v1154 = vld [vmem:[%s1153] sm:$0xf]
      %v1156 = vsel %vm286, %v1154, 0
      %v1159 = vsel %vm290, %v1151, 0
      %v1162 = vsel %vm290, %v1152, 0
      %1164 = vmatpush.msra.mxu0 0.0
      %1165 = vmatpush.msra.mxu0 0.0
      %1166 = vmatpush.msra.mxu0 0.0
      %1167 = vmatpush.msra.mxu0 0.0
      %1168 = vmatpush.msra.mxu0 0.0
      %1169 = vmatpush.msra.mxu0 0.0
      %1170 = vmatpush.msra.mxu0 0.0
      %1171 = vmatpush.msra.mxu0 0.0
      %1172 = vmatpush.msra.mxu0 0.0
      %1173 = vmatpush.msra.mxu0 0.0
      %1174 = vmatpush.msra.mxu0 0.0
      %1175 = vmatpush.msra.mxu0 0.0
      %1176 = vmatpush.msra.mxu0 0.0
      %1177 = vmatpush.msra.mxu0 0.0
      %1178 = vmatpush.msra.mxu0 0.0
      %1179 = vmatpush.msra.mxu0 %v1159
      %1180 = vmatmul.f32.gmra.mxu0 %v1156
      %v1181 = vpop.f32.mrf.mxu0
      %v1182 = vadd.f32 0.0, %v1181
      %1183 = vdwg.mxu0
      %1184 = vmatpush.msra.mxu0 0.0
      %1185 = vmatpush.msra.mxu0 0.0
      %1186 = vmatpush.msra.mxu0 0.0
      %1187 = vmatpush.msra.mxu0 0.0
      %1188 = vmatpush.msra.mxu0 0.0
      %1189 = vmatpush.msra.mxu0 0.0
      %1190 = vmatpush.msra.mxu0 0.0
      %1191 = vmatpush.msra.mxu0 0.0
      %1192 = vmatpush.msra.mxu0 0.0
      %1193 = vmatpush.msra.mxu0 0.0
      %1194 = vmatpush.msra.mxu0 0.0
      %1195 = vmatpush.msra.mxu0 0.0
      %1196 = vmatpush.msra.mxu0 0.0
      %1197 = vmatpush.msra.mxu0 0.0
      %1198 = vmatpush.msra.mxu0 0.0
      %1199 = vmatpush.msra.mxu0 %v1162
      %1200 = vmatmul.f32.gmra.mxu0 %v1156
      %v1201 = vpop.f32.mrf.mxu0
      %v1202 = vadd.f32 0.0, %v1201
      %1203 = vdwg.mxu0
      %v1204 = vadd.f32 %v1141, %v1182
      %v1205 = vadd.f32 %v1142, %v1202
      %1206 = vrot.lane.b32.xlu0 %v845, 113
      %v1207 = vpop.permute.xlu0 %1206
      %1208 = vrot.lane.b32.xlu0 %v846, 113
      %v1209 = vpop.permute.xlu0 %1208
      %v1210 = vsel %vm647, %v1207, %v1209
      %v1213 = vsel %vm647, %v1209, 0.0
      %v1214 = vsel %vm252, %v1210, 0.0
      %v1215 = vsel %vm253, %v1213, 0.0
      %s1216 = scalar_lea.vmem %s3, 24
      %v1217 = vld [vmem:[%s1216] sm:$0xf]
      %v1219 = vsel %vm286, %v1217, 0
      %v1222 = vsel %vm290, %v1214, 0
      %v1225 = vsel %vm290, %v1215, 0
      %1227 = vmatpush.msra.mxu0 0.0
      %1228 = vmatpush.msra.mxu0 0.0
      %1229 = vmatpush.msra.mxu0 0.0
      %1230 = vmatpush.msra.mxu0 0.0
      %1231 = vmatpush.msra.mxu0 0.0
      %1232 = vmatpush.msra.mxu0 0.0
      %1233 = vmatpush.msra.mxu0 0.0
      %1234 = vmatpush.msra.mxu0 0.0
      %1235 = vmatpush.msra.mxu0 0.0
      %1236 = vmatpush.msra.mxu0 0.0
      %1237 = vmatpush.msra.mxu0 0.0
      %1238 = vmatpush.msra.mxu0 0.0
      %1239 = vmatpush.msra.mxu0 0.0
      %1240 = vmatpush.msra.mxu0 0.0
      %1241 = vmatpush.msra.mxu0 0.0
      %1242 = vmatpush.msra.mxu0 %v1222
      %1243 = vmatmul.f32.gmra.mxu0 %v1219
      %v1244 = vpop.f32.mrf.mxu0
      %v1245 = vadd.f32 0.0, %v1244
      %1246 = vdwg.mxu0
      %1247 = vmatpush.msra.mxu0 0.0
      %1248 = vmatpush.msra.mxu0 0.0
      %1249 = vmatpush.msra.mxu0 0.0
      %1250 = vmatpush.msra.mxu0 0.0
      %1251 = vmatpush.msra.mxu0 0.0
      %1252 = vmatpush.msra.mxu0 0.0
      %1253 = vmatpush.msra.mxu0 0.0
      %1254 = vmatpush.msra.mxu0 0.0
      %1255 = vmatpush.msra.mxu0 0.0
      %1256 = vmatpush.msra.mxu0 0.0
      %1257 = vmatpush.msra.mxu0 0.0
      %1258 = vmatpush.msra.mxu0 0.0
      %1259 = vmatpush.msra.mxu0 0.0
      %1260 = vmatpush.msra.mxu0 0.0
      %1261 = vmatpush.msra.mxu0 0.0
      %1262 = vmatpush.msra.mxu0 %v1225
      %1263 = vmatmul.f32.gmra.mxu0 %v1219
      %v1264 = vpop.f32.mrf.mxu0
      %v1265 = vadd.f32 0.0, %v1264
      %1266 = vdwg.mxu0
      %v1267 = vadd.f32 %v1204, %v1245
      %v1268 = vadd.f32 %v1205, %v1265
      %1269 = vrot.lane.b32.xlu0 %v845, 112
      %v1270 = vpop.permute.xlu0 %1269
      %1271 = vrot.lane.b32.xlu0 %v846, 112
      %v1272 = vpop.permute.xlu0 %1271
      %v1273 = vsel %vm714, %v1270, %v1272
      %v1275 = vsel %vm714, %v1272, 0.0
      %s1276 = scalar_lea.vmem %s3, 28
      %v1277 = vld [vmem:[%s1276] sm:$0xf]
      %v1279 = vsel %vm286, %v1277, 0
      %v1281 = vsel %vm290, %v1273, 0
      %v1284 = vsel %vm290, %v1275, 0
      %1286 = vmatpush.msra.mxu0 0.0
      %1287 = vmatpush.msra.mxu0 0.0
      %1288 = vmatpush.msra.mxu0 0.0
      %1289 = vmatpush.msra.mxu0 0.0
      %1290 = vmatpush.msra.mxu0 0.0
      %1291 = vmatpush.msra.mxu0 0.0
      %1292 = vmatpush.msra.mxu0 0.0
      %1293 = vmatpush.msra.mxu0 0.0
      %1294 = vmatpush.msra.mxu0 0.0
      %1295 = vmatpush.msra.mxu0 0.0
      %1296 = vmatpush.msra.mxu0 0.0
      %1297 = vmatpush.msra.mxu0 0.0
      %1298 = vmatpush.msra.mxu0 0.0
      %1299 = vmatpush.msra.mxu0 0.0
      %1300 = vmatpush.msra.mxu0 0.0
      %1301 = vmatpush.msra.mxu0 %v1281
      %1302 = vmatmul.f32.gmra.mxu0 %v1279
      %v1303 = vpop.f32.mrf.mxu0
      %v1304 = vadd.f32 0.0, %v1303
      %1305 = vdwg.mxu0
      %1306 = vmatpush.msra.mxu0 0.0
      %1307 = vmatpush.msra.mxu0 0.0
      %1308 = vmatpush.msra.mxu0 0.0
      %1309 = vmatpush.msra.mxu0 0.0
      %1310 = vmatpush.msra.mxu0 0.0
      %1311 = vmatpush.msra.mxu0 0.0
      %1312 = vmatpush.msra.mxu0 0.0
      %1313 = vmatpush.msra.mxu0 0.0
      %1314 = vmatpush.msra.mxu0 0.0
      %1315 = vmatpush.msra.mxu0 0.0
      %1316 = vmatpush.msra.mxu0 0.0
      %1317 = vmatpush.msra.mxu0 0.0
      %1318 = vmatpush.msra.mxu0 0.0
      %1319 = vmatpush.msra.mxu0 0.0
      %1320 = vmatpush.msra.mxu0 0.0
      %1321 = vmatpush.msra.mxu0 %v1284
      %1322 = vmatmul.f32.gmra.mxu0 %v1279
      %v1323 = vpop.f32.mrf.mxu0
      %v1324 = vadd.f32 0.0, %v1323
      %1325 = vdwg.mxu0
      %v1326 = vadd.f32 %v1267, %v1304
      %v1327 = vadd.f32 %v1268, %v1324
      %1328 = vrot.lane.b32.xlu0 %v845, 111
      %v1329 = vpop.permute.xlu0 %1328
      %1330 = vrot.lane.b32.xlu0 %v846, 111
      %v1331 = vpop.permute.xlu0 %1330
      %v1332 = vsel %vm777, %v1329, %v1331
      %v1335 = vsel %vm777, %v1331, 0.0
      %v1336 = vsel %vm254, %v1332, 0.0
      %v1337 = vsel %vm255, %v1335, 0.0
      %s1338 = scalar_lea.vmem %s3, 32
      %v1339 = vld [vmem:[%s1338] sm:$0xf]
      %v1341 = vsel %vm286, %v1339, 0
      %v1344 = vsel %vm290, %v1336, 0
      %v1347 = vsel %vm290, %v1337, 0
      %1349 = vmatpush.msra.mxu0 0.0
      %1350 = vmatpush.msra.mxu0 0.0
      %1351 = vmatpush.msra.mxu0 0.0
      %1352 = vmatpush.msra.mxu0 0.0
      %1353 = vmatpush.msra.mxu0 0.0
      %1354 = vmatpush.msra.mxu0 0.0
      %1355 = vmatpush.msra.mxu0 0.0
      %1356 = vmatpush.msra.mxu0 0.0
      %1357 = vmatpush.msra.mxu0 0.0
      %1358 = vmatpush.msra.mxu0 0.0
      %1359 = vmatpush.msra.mxu0 0.0
      %1360 = vmatpush.msra.mxu0 0.0
      %1361 = vmatpush.msra.mxu0 0.0
      %1362 = vmatpush.msra.mxu0 0.0
      %1363 = vmatpush.msra.mxu0 0.0
      %1364 = vmatpush.msra.mxu0 %v1344
      %1365 = vmatmul.f32.gmra.mxu0 %v1341
      %v1366 = vpop.f32.mrf.mxu0
      %v1367 = vadd.f32 0.0, %v1366
      %1368 = vdwg.mxu0
      %1369 = vmatpush.msra.mxu0 0.0
      %1370 = vmatpush.msra.mxu0 0.0
      %1371 = vmatpush.msra.mxu0 0.0
      %1372 = vmatpush.msra.mxu0 0.0
      %1373 = vmatpush.msra.mxu0 0.0
      %1374 = vmatpush.msra.mxu0 0.0
      %1375 = vmatpush.msra.mxu0 0.0
      %1376 = vmatpush.msra.mxu0 0.0
      %1377 = vmatpush.msra.mxu0 0.0
      %1378 = vmatpush.msra.mxu0 0.0
      %1379 = vmatpush.msra.mxu0 0.0
      %1380 = vmatpush.msra.mxu0 0.0
      %1381 = vmatpush.msra.mxu0 0.0
      %1382 = vmatpush.msra.mxu0 0.0
      %1383 = vmatpush.msra.mxu0 0.0
      %1384 = vmatpush.msra.mxu0 %v1347
      %1385 = vmatmul.f32.gmra.mxu0 %v1341
      %v1386 = vpop.f32.mrf.mxu0
      %v1387 = vadd.f32 0.0, %v1386
      %1388 = vdwg.mxu0
      %v1389 = vadd.f32 %v1326, %v1367
      %v1390 = vadd.f32 %v1327, %v1387
      %v1391 = vld [vmem:[%s4] sm:$0xf]
      %1393 = vset.pattern.permute.xlu0 0
      %1394 = vperm.xlu0 %1393, %v1391
      %v1395 = vpop.permute.xlu0 %1394
      %v1397 = vadd.f32 %v1389, %v1395
      %v1398 = vadd.f32 %v1390, %v1395
      %1399 = vst [vmem:[#allocation1] ss:$2 sm:$0xff] %v256
      %v1400 = vld.sshfl [vmem:[#allocation1] sm:$0xff pattern:$0x75316420]
      %v1401 = vld.sshfl [vmem:[#allocation1 + $0x8] sm:$0xff pattern:$0x75316420]
      %v1404 = vadd.f32 %v1397, %v1400
      %v1405 = vadd.f32 %v1398, %v1401
      %v1406 = vmax.f32 %v1404, 0.0
      %v1407 = vmax.f32 %v1405, 0.0
      %v1410 = vrot.slane %v1407, 4
      %v1411 = vsel %vm290, %v1406, %v1410
      %1413 = vst [vmem:[%s224] sm:$0xff] %v1411
      %p1414 = scmp.lt.s32.totalorder %s16, 1
      %s1415 = scalar_select %p1414, %s16, 1
      %s1416 = smul.addr %s1415, 2
      %s1417 = smul.addr %s1416, 4
      %s1418 = scalar_lea.vmem %s5, %s1417
      // Predicated region
      $region41: #{residual_block_pallas.1} parent=39 // pred_check
        %p1419 = pneg %p144
      $region42: #{residual_block_pallas.1} parent=39 // pred_check_branch
        %1421 = sbr.rel (%p1419) target = $region44
      $region43: #{residual_block_pallas.1} parent=39 // pred_region
        _
      $region44: #{residual_block_pallas.1} parent=39 // pred_fallthru
        _
    $region40: #{residual_block_pallas.1} parent=5 // pred_fallthru
      _
    %p1422 = scmp.le.s32.totalorder 2, %s11
    // Predicated region
    $region45: #{residual_block_pallas.1} parent=5 // pred_check
      %p1423 = pneg %p1422
    $region46: #{residual_block_pallas.1} parent=5 // pred_check_branch
      %1425 = sbr.rel (%p1423) target = $region48
    $region47: #{residual_block_pallas.1} parent=5 // pred_region
      %s1426 = ssub.s32 %s11, 2
      // Predicated region
      $region49: #{residual_block_pallas.1} parent=47 // pred_check
        %p1427 = pneg %p150
      $region50: #{residual_block_pallas.1} parent=47 // pred_check_branch
        %1429 = sbr.rel (%p1427) target = $region52
      $region51: #{residual_block_pallas.1} parent=47 // pred_region
        %p1430 = scmp.lt.s32.totalorder %s17, 1
        %s1431 = scalar_select %p1430, %s17, 1
        %s1432 = smul.addr %s1431, 2
        %s1433 = smul.addr %s1432, 4
        %s1434 = scalar_lea.vmem %s5, %s1433
      $region52: #{residual_block_pallas.1} parent=47 // pred_fallthru
        _
    $region48: #{residual_block_pallas.1} parent=5 // pred_fallthru
      _
  $region6: #{residual_block_pallas.1} parent=0 // loop_footer
    %s15 = sadd.s32 1, %s11
  $region7: #{residual_block_pallas.1} parent=0 // loop_footer_branch
    %10 = sbr.rel target = $region3
  $region8: #{residual_block_pallas.1} parent=0 // loop_exit
    _

</llo_original>
